<compile_context>
chip_gen: v7x
topology: tpu7x:2x2x1
jax: 0.10.0
libtpu: 0.0.40
codegen_flags: <defaults>
</compile_context>

<pallas_src>
import jax
import jax.numpy as jnp
from jax import lax
from jax.experimental import pallas as pl
from jax.experimental.pallas import tpu as pltpu


def make_mlp_kernel(softplus_correction_dtype=jnp.float32):
    """Build the fused 4-layer MLP kernel.

    softplus_correction_dtype: dtype for the log1p(exp(-|z|)) correction term
    (jnp.bfloat16 halves EUP pressure on v6e/v7x; keep f32 on v5e or when
    strict accuracy is required).
    """

    def _softplus(z):
        # Numerically stable softplus: max(z, 0) + log1p(exp(-|z|)).
        corr = jnp.log1p(jnp.exp(-jnp.abs(z).astype(softplus_correction_dtype)))
        return jnp.maximum(z, 0.0) + corr.astype(jnp.float32)

    def mlp_kernel(x_ref, w1_ref, b1_ref, w2_ref, b2_ref,
                   w3_ref, b3_ref, w4_ref, b4_ref, o_ref):
        mm_dtype = w1_ref.dtype            # f32, or bf16 when streaming in bf16
        x_blk = x_ref[...].astype(mm_dtype)                        # (tile, x_in)
        # Layer 1 contracts x_in on BOTH operands: (H,x_in)·(tile,x_in)^T ->
        # (H, tile).  The batch->lane transpose is folded into the MXU
        # contraction; no wrapper- or kernel-level transpose of x materialises.
        h = lax.dot_general(w1_ref[...], x_blk,
                            dimension_numbers=(((1,), (1,)), ((), ())),
                            preferred_element_type=jnp.float32)    # (H, tile)
        h = _softplus(h + b1_ref[...]).astype(mm_dtype)
        h = jnp.dot(w2_ref[...], h, preferred_element_type=jnp.float32)
        h = _softplus(h + b2_ref[...]).astype(mm_dtype)
        h = jnp.dot(w3_ref[...], h, preferred_element_type=jnp.float32)
        h = _softplus(h + b3_ref[...]).astype(mm_dtype)
        y = jnp.dot(w4_ref[...], h, preferred_element_type=jnp.float32)
        o_ref[...] = (y + b4_ref[...]).astype(o_ref.dtype)         # (x_out, tile)

    return mlp_kernel


def prepare_params(params, compute_dtype=jnp.float32):
    """One-time layout/dtype prep (hoisted out of the per-call wrapper).

    params: PyTorch-layout dict, w_i: (out, in), b_i: (out,).
    Weights stay (out, in), cast to compute_dtype (bf16 streaming is valid on
    v5e/v6e/v7x; accumulation remains f32).  Biases become (out, 1) f32
    columns that broadcast along the lane (batch) axis.
    """
    out = {}
    for i in (1, 2, 3, 4):
        out[f"w{i}"] = jnp.asarray(params[f"w{i}"], compute_dtype)
        out[f"b{i}"] = jnp.asarray(params[f"b{i}"], jnp.float32).reshape(-1, 1)
    return out


def _tensorcores_per_chip():
    """2 TensorCores per chip on v7x; 1 on v5e/v6e (unknown -> 1)."""
    try:
        kind = jax.devices()[0].device_kind.lower()
    except Exception:
        return 1
    return 2 if "v7" in kind else 1


def model_latent_f(x, prepared, *, tile_n=2048, softplus_bf16_correction=False):
    """Forward pass of ModelLatentF.  x: (N, x_in);  prepared: see prepare_params."""
    N, x_in = x.shape
    H = prepared["w1"].shape[0]
    x_out = prepared["w4"].shape[0]

    p = prepared
    flat = (p["w1"], p["b1"], p["w2"], p["b2"], p["w3"], p["b3"], p["w4"], p["b4"])

    cores = _tensorcores_per_chip()

    if N >= 128:
        # Lane-dense tiles (multiples of 128) that never exceed N; ragged N is
        # handled by Pallas' partial-last-block masking -- no jnp.pad HBM copy.
        tile = min(max(128, (tile_n // 128) * 128), (N // 128) * 128)
        if cores > 1:
            # v7x: cap the tile so the "parallel" grid has >= `cores` steps.
            per_core = max(128, pl.cdiv(pl.cdiv(N, 128), cores) * 128)
            tile = min(tile, per_core)
        grid = (pl.cdiv(N, tile),)
    else:
        # Tiny batch: single full-extent block (lane-masked stores are fine here).
        tile = N
        grid = (1,)

    kernel = make_mlp_kernel(
        jnp.bfloat16 if softplus_bf16_correction else jnp.float32)

    # Explicit VMEM limit with generous margin: fail-fast insurance against the
    # v7x 64 MiB ceiling if H or tile_n are scaled up later.
    param_bytes = sum(int(a.size) * a.dtype.itemsize for a in flat)
    act_bytes = tile * (x_in * x.dtype.itemsize + x_out * 4)   # in + out tiles
    inter_bytes = 3 * tile * H * 4                             # f32 intermediates
    est = 2 * (act_bytes + param_bytes + inter_bytes)
    vmem_limit = int(min(max(4 * est, 16 << 20), 64 << 20))

    def build(single_buffer_params):
        def rep(arr):
            # Replicated (grid-invariant) operand: full-array block, constant
            # block index.  Single-buffered when supported -- a second pipeline
            # buffer is dead VMEM plus an extra initial DMA.
            if single_buffer_params:
                return pl.BlockSpec(arr.shape, lambda i: (0, 0),
                                    pipeline_mode=pl.Buffered(1))
            return pl.BlockSpec(arr.shape, lambda i: (0, 0))

        in_specs = [pl.BlockSpec((tile, x_in), lambda i: (i, 0))]  # x, untransposed
        in_specs += [rep(a) for a in flat]
        return pl.pallas_call(
            kernel,
            out_shape=jax.ShapeDtypeStruct((x_out, N), jnp.float32),
            grid=grid,
            in_specs=in_specs,
            out_specs=pl.BlockSpec((x_out, tile), lambda i: (0, i)),
            compiler_params=pltpu.CompilerParams(
                dimension_semantics=("parallel",),
                vmem_limit_bytes=vmem_limit),
        )

    try:
        out_t = build(True)(x, *flat)     # single-buffered replicated params
    except Exception:
        out_t = build(False)(x, *flat)    # fallback: default double-buffering

    # (x_out, N) -> (N, x_out).  Tiny wrapper transpose + cast keeps the kernel
    # output tile lane-dense f32 (no sublane-masked narrow-dtype stores).
    return out_t.T.astype(x.dtype)


def init_params(key, x_in, H, x_out):
    """Deterministic init mimicking torch.nn.Linear default (uniform +/- 1/sqrt(fan_in))."""
    def linear(k, fan_in, fan_out):
        kw, kb = jax.random.split(k)
        bound = 1.0 / jnp.sqrt(fan_in)
        w = jax.random.uniform(kw, (fan_out, fan_in), jnp.float32, -bound, bound)
        b = jax.random.uniform(kb, (fan_out,), jnp.float32, -bound, bound)
        return w, b

    k1, k2, k3, k4 = jax.random.split(key, 4)
    w1, b1 = linear(k1, x_in, H)
    w2, b2 = linear(k2, H, H)
    w3, b3 = linear(k3, H, H)
    w4, b4 = linear(k4, H, x_out)
    return dict(w1=w1, b1=b1, w2=w2, b2=b2, w3=w3, b3=b3, w4=w4, b4=b4)


def reference_forward(x, p):
    h = jax.nn.softplus(x @ p["w1"].T + p["b1"])
    h = jax.nn.softplus(h @ p["w2"].T + p["b2"])
    h = jax.nn.softplus(h @ p["w3"].T + p["b3"])
    return h @ p["w4"].T + p["b4"]


if __name__ == "__main__":
    # Small shapes consistent with the module.
    N, x_in, H, x_out = 256, 16, 32, 8

    key = jax.random.PRNGKey(0)
    kx, kp = jax.random.split(key)
    x = jax.random.normal(kx, (N, x_in), jnp.float32)
    params = init_params(kp, x_in, H, x_out)

    prepared = prepare_params(params)                   # f32 weights

    out = jax.block_until_ready(model_latent_f(x, prepared))
    ref = reference_forward(x, params)
    assert out.shape == (N, x_out)
    assert jnp.allclose(out, ref, atol=1e-4, rtol=1e-4), "f32 mismatch vs reference"

    # Ragged batch (not a multiple of 128): partial-last-block path, no pad.
    x2 = jax.random.normal(jax.random.PRNGKey(1), (200, x_in), jnp.float32)
    out2 = jax.block_until_ready(model_latent_f(x2, prepared))
    ref2 = reference_forward(x2, params)
    assert out2.shape == (200, x_out)
    assert jnp.allclose(out2, ref2, atol=1e-4, rtol=1e-4), "ragged mismatch vs reference"

    # Tiny batch (< 128): single full-extent block path.
    x3 = jax.random.normal(jax.random.PRNGKey(2), (100, x_in), jnp.float32)
    out3 = jax.block_until_ready(model_latent_f(x3, prepared))
    ref3 = reference_forward(x3, params)
    assert out3.shape == (100, x_out)
    assert jnp.allclose(out3, ref3, atol=1e-4, rtol=1e-4), "small-batch mismatch vs reference"

    # bf16 streaming path (valid on v5e as well as v6e/v7x); matmuls still
    # accumulate in f32 -- validated with a looser tolerance.
    prepared_bf16 = prepare_params(params, compute_dtype=jnp.bfloat16)
    out_bf16 = jax.block_until_ready(model_latent_f(x, prepared_bf16))
    assert out_bf16.shape == (N, x_out)
    assert jnp.allclose(out_bf16, ref, atol=1e-1, rtol=1e-1), "bf16 mismatch vs reference"

    print("KERNEL_OK")
</pallas_src>

<mosaic_0001>
module attributes {stable_mosaic.version = 11 : i64} {
  func.func @mlp_kernel(%arg0: i32, %arg1: memref<256x16xf32, #tpu.memory_space<vmem>>, %arg2: memref<32x16xf32, #tpu.memory_space<vmem>>, %arg3: memref<32x1xf32, #tpu.memory_space<vmem>>, %arg4: memref<32x32xf32, #tpu.memory_space<vmem>>, %arg5: memref<32x1xf32, #tpu.memory_space<vmem>>, %arg6: memref<32x32xf32, #tpu.memory_space<vmem>>, %arg7: memref<32x1xf32, #tpu.memory_space<vmem>>, %arg8: memref<8x32xf32, #tpu.memory_space<vmem>>, %arg9: memref<8x1xf32, #tpu.memory_space<vmem>>, %arg10: memref<8x256xf32, #tpu.memory_space<vmem>>) attributes {dimension_semantics = [#tpu.dimension_semantics<parallel>], iteration_bounds = array<i64: 1>, scalar_prefetch = 0 : i64, scratch_operands = 0 : i64, tpu.core_type = #tpu.core_type<tc>, window_params = [{transform_indices = @transform_0, window_bounds = array<i64: 256, 16>}, {pipeline_mode = #tpu.pipeline_mode<synchronous>, transform_indices = @transform_1, window_bounds = array<i64: 32, 16>}, {pipeline_mode = #tpu.pipeline_mode<synchronous>, transform_indices = @transform_2, window_bounds = array<i64: 32, 1>}, {pipeline_mode = #tpu.pipeline_mode<synchronous>, transform_indices = @transform_3, window_bounds = array<i64: 32, 32>}, {pipeline_mode = #tpu.pipeline_mode<synchronous>, transform_indices = @transform_4, window_bounds = array<i64: 32, 1>}, {pipeline_mode = #tpu.pipeline_mode<synchronous>, transform_indices = @transform_5, window_bounds = array<i64: 32, 32>}, {pipeline_mode = #tpu.pipeline_mode<synchronous>, transform_indices = @transform_6, window_bounds = array<i64: 32, 1>}, {pipeline_mode = #tpu.pipeline_mode<synchronous>, transform_indices = @transform_7, window_bounds = array<i64: 8, 32>}, {pipeline_mode = #tpu.pipeline_mode<synchronous>, transform_indices = @transform_8, window_bounds = array<i64: 8, 1>}, {transform_indices = @transform_9, window_bounds = array<i64: 8, 256>}]} {
    %c0 = arith.constant 0 : index
    %c0_0 = arith.constant 0 : index
    %0 = vector.load %arg1[%c0, %c0_0] : memref<256x16xf32, #tpu.memory_space<vmem>>, vector<256x16xf32>
    %c0_1 = arith.constant 0 : index
    %c0_2 = arith.constant 0 : index
    %1 = vector.load %arg2[%c0_1, %c0_2] : memref<32x16xf32, #tpu.memory_space<vmem>>, vector<32x16xf32>
    %cst = arith.constant dense<0.000000e+00> : vector<32x256xf32>
    %2 = tpu.matmul %1, %0, %cst {dimension_numbers = #tpu.dot_dimension_numbers<[1], [1], [0], [0], [0, 0, 1, 0], [], []>} : vector<32x16xf32>, vector<256x16xf32>, vector<32x256xf32> -> vector<32x256xf32>
    %c0_3 = arith.constant 0 : index
    %c0_4 = arith.constant 0 : index
    %3 = vector.load %arg3[%c0_3, %c0_4] : memref<32x1xf32, #tpu.memory_space<vmem>>, vector<32x1xf32>
    %4 = vector.broadcast %3 : vector<32x1xf32> to vector<32x256xf32>
    %5 = arith.addf %2, %4 : vector<32x256xf32>
    %6 = math.absf %5 : vector<32x256xf32>
    %cst_5 = arith.constant 0.000000e+00 : f32
    %7 = vector.broadcast %cst_5 : f32 to vector<32x256xf32>
    %8 = arith.subf %7, %6 : vector<32x256xf32>
    %9 = math.exp %8 : vector<32x256xf32>
    %10 = math.log1p %9 : vector<32x256xf32>
    %cst_6 = arith.constant 0.000000e+00 : f32
    %11 = vector.broadcast %cst_6 : f32 to vector<32x256xf32>
    %12 = arith.maximumf %5, %11 : vector<32x256xf32>
    %13 = arith.addf %12, %10 : vector<32x256xf32>
    %c0_7 = arith.constant 0 : index
    %c0_8 = arith.constant 0 : index
    %14 = vector.load %arg4[%c0_7, %c0_8] : memref<32x32xf32, #tpu.memory_space<vmem>>, vector<32x32xf32>
    %cst_9 = arith.constant dense<0.000000e+00> : vector<32x256xf32>
    %15 = tpu.matmul %14, %13, %cst_9 {dimension_numbers = #tpu.dot_dimension_numbers<[1], [0], [0], [1], [0, 0, 1, 1], [], []>} : vector<32x32xf32>, vector<32x256xf32>, vector<32x256xf32> -> vector<32x256xf32>
    %c0_10 = arith.constant 0 : index
    %c0_11 = arith.constant 0 : index
    %16 = vector.load %arg5[%c0_10, %c0_11] : memref<32x1xf32, #tpu.memory_space<vmem>>, vector<32x1xf32>
    %17 = vector.broadcast %16 : vector<32x1xf32> to vector<32x256xf32>
    %18 = arith.addf %15, %17 : vector<32x256xf32>
    %19 = math.absf %18 : vector<32x256xf32>
    %cst_12 = arith.constant 0.000000e+00 : f32
    %20 = vector.broadcast %cst_12 : f32 to vector<32x256xf32>
    %21 = arith.subf %20, %19 : vector<32x256xf32>
    %22 = math.exp %21 : vector<32x256xf32>
    %23 = math.log1p %22 : vector<32x256xf32>
    %cst_13 = arith.constant 0.000000e+00 : f32
    %24 = vector.broadcast %cst_13 : f32 to vector<32x256xf32>
    %25 = arith.maximumf %18, %24 : vector<32x256xf32>
    %26 = arith.addf %25, %23 : vector<32x256xf32>
    %c0_14 = arith.constant 0 : index
    %c0_15 = arith.constant 0 : index
    %27 = vector.load %arg6[%c0_14, %c0_15] : memref<32x32xf32, #tpu.memory_space<vmem>>, vector<32x32xf32>
    %cst_16 = arith.constant dense<0.000000e+00> : vector<32x256xf32>
    %28 = tpu.matmul %27, %26, %cst_16 {dimension_numbers = #tpu.dot_dimension_numbers<[1], [0], [0], [1], [0, 0, 1, 1], [], []>} : vector<32x32xf32>, vector<32x256xf32>, vector<32x256xf32> -> vector<32x256xf32>
    %c0_17 = arith.constant 0 : index
    %c0_18 = arith.constant 0 : index
    %29 = vector.load %arg7[%c0_17, %c0_18] : memref<32x1xf32, #tpu.memory_space<vmem>>, vector<32x1xf32>
    %30 = vector.broadcast %29 : vector<32x1xf32> to vector<32x256xf32>
    %31 = arith.addf %28, %30 : vector<32x256xf32>
    %32 = math.absf %31 : vector<32x256xf32>
    %cst_19 = arith.constant 0.000000e+00 : f32
    %33 = vector.broadcast %cst_19 : f32 to vector<32x256xf32>
    %34 = arith.subf %33, %32 : vector<32x256xf32>
    %35 = math.exp %34 : vector<32x256xf32>
    %36 = math.log1p %35 : vector<32x256xf32>
    %cst_20 = arith.constant 0.000000e+00 : f32
    %37 = vector.broadcast %cst_20 : f32 to vector<32x256xf32>
    %38 = arith.maximumf %31, %37 : vector<32x256xf32>
    %39 = arith.addf %38, %36 : vector<32x256xf32>
    %c0_21 = arith.constant 0 : index
    %c0_22 = arith.constant 0 : index
    %40 = vector.load %arg8[%c0_21, %c0_22] : memref<8x32xf32, #tpu.memory_space<vmem>>, vector<8x32xf32>
    %cst_23 = arith.constant dense<0.000000e+00> : vector<8x256xf32>
    %41 = tpu.matmul %40, %39, %cst_23 {dimension_numbers = #tpu.dot_dimension_numbers<[1], [0], [0], [1], [0, 0, 1, 1], [], []>} : vector<8x32xf32>, vector<32x256xf32>, vector<8x256xf32> -> vector<8x256xf32>
    %c0_24 = arith.constant 0 : index
    %c0_25 = arith.constant 0 : index
    %42 = vector.load %arg9[%c0_24, %c0_25] : memref<8x1xf32, #tpu.memory_space<vmem>>, vector<8x1xf32>
    %43 = vector.broadcast %42 : vector<8x1xf32> to vector<8x256xf32>
    %44 = arith.addf %41, %43 : vector<8x256xf32>
    %c0_26 = arith.constant 0 : index
    %c0_27 = arith.constant 0 : index
    %45 = vector.load %arg10[%c0_26, %c0_27] : memref<8x256xf32, #tpu.memory_space<vmem>>, vector<8x256xf32>
    tpu.vector_store %arg10[%c0_26, %c0_27], %44 {strides = array<i32>} : memref<8x256xf32, #tpu.memory_space<vmem>>, vector<8x256xf32>,
    return
  }
  func.func @transform_0(%arg0: i32) -> (i32, i32) {
    %c0_i32 = arith.constant 0 : i32
    %c0_i32_0 = arith.constant 0 : i32
    return %arg0, %c0_i32 : i32, i32
  }
  func.func @transform_1(%arg0: i32) -> (i32, i32) {
    %c0_i32 = arith.constant 0 : i32
    %c0_i32_0 = arith.constant 0 : i32
    %c0_i32_1 = arith.constant 0 : i32
    return %c0_i32, %c0_i32_0 : i32, i32
  }
  func.func @transform_2(%arg0: i32) -> (i32, i32) {
    %c0_i32 = arith.constant 0 : i32
    %c0_i32_0 = arith.constant 0 : i32
    %c0_i32_1 = arith.constant 0 : i32
    return %c0_i32, %c0_i32_0 : i32, i32
  }
  func.func @transform_3(%arg0: i32) -> (i32, i32) {
    %c0_i32 = arith.constant 0 : i32
    %c0_i32_0 = arith.constant 0 : i32
    %c0_i32_1 = arith.constant 0 : i32
    return %c0_i32, %c0_i32_0 : i32, i32
  }
  func.func @transform_4(%arg0: i32) -> (i32, i32) {
    %c0_i32 = arith.constant 0 : i32
    %c0_i32_0 = arith.constant 0 : i32
    %c0_i32_1 = arith.constant 0 : i32
    return %c0_i32, %c0_i32_0 : i32, i32
  }
  func.func @transform_5(%arg0: i32) -> (i32, i32) {
    %c0_i32 = arith.constant 0 : i32
    %c0_i32_0 = arith.constant 0 : i32
    %c0_i32_1 = arith.constant 0 : i32
    return %c0_i32, %c0_i32_0 : i32, i32
  }
  func.func @transform_6(%arg0: i32) -> (i32, i32) {
    %c0_i32 = arith.constant 0 : i32
    %c0_i32_0 = arith.constant 0 : i32
    %c0_i32_1 = arith.constant 0 : i32
    return %c0_i32, %c0_i32_0 : i32, i32
  }
  func.func @transform_7(%arg0: i32) -> (i32, i32) {
    %c0_i32 = arith.constant 0 : i32
    %c0_i32_0 = arith.constant 0 : i32
    %c0_i32_1 = arith.constant 0 : i32
    return %c0_i32, %c0_i32_0 : i32, i32
  }
  func.func @transform_8(%arg0: i32) -> (i32, i32) {
    %c0_i32 = arith.constant 0 : i32
    %c0_i32_0 = arith.constant 0 : i32
    %c0_i32_1 = arith.constant 0 : i32
    return %c0_i32, %c0_i32_0 : i32, i32
  }
  func.func @transform_9(%arg0: i32) -> (i32, i32) {
    %c0_i32 = arith.constant 0 : i32
    %c0_i32_0 = arith.constant 0 : i32
    return %c0_i32, %arg0 : i32, i32
  }
}

module attributes {stable_mosaic.version = 11 : i64} {
  func.func @mlp_kernel(%arg0: i32, %arg1: memref<256x16xf32, #tpu.memory_space<vmem>>, %arg2: memref<32x16xf32, #tpu.memory_space<vmem>>, %arg3: memref<32x1xf32, #tpu.memory_space<vmem>>, %arg4: memref<32x32xf32, #tpu.memory_space<vmem>>, %arg5: memref<32x1xf32, #tpu.memory_space<vmem>>, %arg6: memref<32x32xf32, #tpu.memory_space<vmem>>, %arg7: memref<32x1xf32, #tpu.memory_space<vmem>>, %arg8: memref<8x32xf32, #tpu.memory_space<vmem>>, %arg9: memref<8x1xf32, #tpu.memory_space<vmem>>, %arg10: memref<8x256xf32, #tpu.memory_space<vmem>>) attributes {dimension_semantics = [#tpu.dimension_semantics<parallel>], iteration_bounds = array<i64: 1>, scalar_prefetch = 0 : i64, scratch_operands = 0 : i64, tpu.core_type = #tpu.core_type<tc>, window_params = [{transform_indices = @transform_0, window_bounds = array<i64: 256, 16>}, {pipeline_mode = #tpu.pipeline_mode<synchronous>, transform_indices = @transform_1, window_bounds = array<i64: 32, 16>}, {pipeline_mode = #tpu.pipeline_mode<synchronous>, transform_indices = @transform_2, window_bounds = array<i64: 32, 1>}, {pipeline_mode = #tpu.pipeline_mode<synchronous>, transform_indices = @transform_3, window_bounds = array<i64: 32, 32>}, {pipeline_mode = #tpu.pipeline_mode<synchronous>, transform_indices = @transform_4, window_bounds = array<i64: 32, 1>}, {pipeline_mode = #tpu.pipeline_mode<synchronous>, transform_indices = @transform_5, window_bounds = array<i64: 32, 32>}, {pipeline_mode = #tpu.pipeline_mode<synchronous>, transform_indices = @transform_6, window_bounds = array<i64: 32, 1>}, {pipeline_mode = #tpu.pipeline_mode<synchronous>, transform_indices = @transform_7, window_bounds = array<i64: 8, 32>}, {pipeline_mode = #tpu.pipeline_mode<synchronous>, transform_indices = @transform_8, window_bounds = array<i64: 8, 1>}, {transform_indices = @transform_9, window_bounds = array<i64: 8, 256>}]} {
    %c0 = arith.constant 0 : index
    %c0_0 = arith.constant 0 : index
    %0 = vector.load %arg1[%c0, %c0_0] : memref<256x16xf32, #tpu.memory_space<vmem>>, vector<256x16xf32>
    %c0_1 = arith.constant 0 : index
    %c0_2 = arith.constant 0 : index
    %1 = vector.load %arg2[%c0_1, %c0_2] : memref<32x16xf32, #tpu.memory_space<vmem>>, vector<32x16xf32>
    %cst = arith.constant dense<0.000000e+00> : vector<32x256xf32>
    %2 = tpu.matmul %1, %0, %cst {dimension_numbers = #tpu.dot_dimension_numbers<[1], [1], [0], [0], [0, 0, 1, 0], [], []>} : vector<32x16xf32>, vector<256x16xf32>, vector<32x256xf32> -> vector<32x256xf32>
    %c0_3 = arith.constant 0 : index
    %c0_4 = arith.constant 0 : index
    %3 = vector.load %arg3[%c0_3, %c0_4] : memref<32x1xf32, #tpu.memory_space<vmem>>, vector<32x1xf32>
    %4 = vector.broadcast %3 : vector<32x1xf32> to vector<32x256xf32>
    %5 = arith.addf %2, %4 : vector<32x256xf32>
    %6 = math.absf %5 : vector<32x256xf32>
    %cst_5 = arith.constant 0.000000e+00 : f32
    %7 = vector.broadcast %cst_5 : f32 to vector<32x256xf32>
    %8 = arith.subf %7, %6 : vector<32x256xf32>
    %9 = math.exp %8 : vector<32x256xf32>
    %10 = math.log1p %9 : vector<32x256xf32>
    %cst_6 = arith.constant 0.000000e+00 : f32
    %11 = vector.broadcast %cst_6 : f32 to vector<32x256xf32>
    %12 = arith.maximumf %5, %11 : vector<32x256xf32>
    %13 = arith.addf %12, %10 : vector<32x256xf32>
    %c0_7 = arith.constant 0 : index
    %c0_8 = arith.constant 0 : index
    %14 = vector.load %arg4[%c0_7, %c0_8] : memref<32x32xf32, #tpu.memory_space<vmem>>, vector<32x32xf32>
    %cst_9 = arith.constant dense<0.000000e+00> : vector<32x256xf32>
    %15 = tpu.matmul %14, %13, %cst_9 {dimension_numbers = #tpu.dot_dimension_numbers<[1], [0], [0], [1], [0, 0, 1, 1], [], []>} : vector<32x32xf32>, vector<32x256xf32>, vector<32x256xf32> -> vector<32x256xf32>
    %c0_10 = arith.constant 0 : index
    %c0_11 = arith.constant 0 : index
    %16 = vector.load %arg5[%c0_10, %c0_11] : memref<32x1xf32, #tpu.memory_space<vmem>>, vector<32x1xf32>
    %17 = vector.broadcast %16 : vector<32x1xf32> to vector<32x256xf32>
    %18 = arith.addf %15, %17 : vector<32x256xf32>
    %19 = math.absf %18 : vector<32x256xf32>
    %cst_12 = arith.constant 0.000000e+00 : f32
    %20 = vector.broadcast %cst_12 : f32 to vector<32x256xf32>
    %21 = arith.subf %20, %19 : vector<32x256xf32>
    %22 = math.exp %21 : vector<32x256xf32>
    %23 = math.log1p %22 : vector<32x256xf32>
    %cst_13 = arith.constant 0.000000e+00 : f32
    %24 = vector.broadcast %cst_13 : f32 to vector<32x256xf32>
    %25 = arith.maximumf %18, %24 : vector<32x256xf32>
    %26 = arith.addf %25, %23 : vector<32x256xf32>
    %c0_14 = arith.constant 0 : index
    %c0_15 = arith.constant 0 : index
    %27 = vector.load %arg6[%c0_14, %c0_15] : memref<32x32xf32, #tpu.memory_space<vmem>>, vector<32x32xf32>
    %cst_16 = arith.constant dense<0.000000e+00> : vector<32x256xf32>
    %28 = tpu.matmul %27, %26, %cst_16 {dimension_numbers = #tpu.dot_dimension_numbers<[1], [0], [0], [1], [0, 0, 1, 1], [], []>} : vector<32x32xf32>, vector<32x256xf32>, vector<32x256xf32> -> vector<32x256xf32>
    %c0_17 = arith.constant 0 : index
    %c0_18 = arith.constant 0 : index
    %29 = vector.load %arg7[%c0_17, %c0_18] : memref<32x1xf32, #tpu.memory_space<vmem>>, vector<32x1xf32>
    %30 = vector.broadcast %29 : vector<32x1xf32> to vector<32x256xf32>
    %31 = arith.addf %28, %30 : vector<32x256xf32>
    %32 = math.absf %31 : vector<32x256xf32>
    %cst_19 = arith.constant 0.000000e+00 : f32
    %33 = vector.broadcast %cst_19 : f32 to vector<32x256xf32>
    %34 = arith.subf %33, %32 : vector<32x256xf32>
    %35 = math.exp %34 : vector<32x256xf32>
    %36 = math.log1p %35 : vector<32x256xf32>
    %cst_20 = arith.constant 0.000000e+00 : f32
    %37 = vector.broadcast %cst_20 : f32 to vector<32x256xf32>
    %38 = arith.maximumf %31, %37 : vector<32x256xf32>
    %39 = arith.addf %38, %36 : vector<32x256xf32>
    %c0_21 = arith.constant 0 : index
    %c0_22 = arith.constant 0 : index
    %40 = vector.load %arg8[%c0_21, %c0_22] : memref<8x32xf32, #tpu.memory_space<vmem>>, vector<8x32xf32>
    %cst_23 = arith.constant dense<0.000000e+00> : vector<8x256xf32>
    %41 = tpu.matmul %40, %39, %cst_23 {dimension_numbers = #tpu.dot_dimension_numbers<[1], [0], [0], [1], [0, 0, 1, 1], [], []>} : vector<8x32xf32>, vector<32x256xf32>, vector<8x256xf32> -> vector<8x256xf32>
    %c0_24 = arith.constant 0 : index
    %c0_25 = arith.constant 0 : index
    %42 = vector.load %arg9[%c0_24, %c0_25] : memref<8x1xf32, #tpu.memory_space<vmem>>, vector<8x1xf32>
    %43 = vector.broadcast %42 : vector<8x1xf32> to vector<8x256xf32>
    %44 = arith.addf %41, %43 : vector<8x256xf32>
    %c0_26 = arith.constant 0 : index
    %c0_27 = arith.constant 0 : index
    %45 = vector.load %arg10[%c0_26, %c0_27] : memref<8x256xf32, #tpu.memory_space<vmem>>, vector<8x256xf32>
    tpu.vector_store %arg10[%c0_26, %c0_27], %44 {strides = array<i32>} : memref<8x256xf32, #tpu.memory_space<vmem>>, vector<8x256xf32>,
    return
  }
  func.func @transform_0(%arg0: i32) -> (i32, i32) {
    %c0_i32 = arith.constant 0 : i32
    %c0_i32_0 = arith.constant 0 : i32
    return %arg0, %c0_i32 : i32, i32
  }
  func.func @transform_1(%arg0: i32) -> (i32, i32) {
    %c0_i32 = arith.constant 0 : i32
    %c0_i32_0 = arith.constant 0 : i32
    %c0_i32_1 = arith.constant 0 : i32
    return %c0_i32, %c0_i32_0 : i32, i32
  }
  func.func @transform_2(%arg0: i32) -> (i32, i32) {
    %c0_i32 = arith.constant 0 : i32
    %c0_i32_0 = arith.constant 0 : i32
    %c0_i32_1 = arith.constant 0 : i32
    return %c0_i32, %c0_i32_0 : i32, i32
  }
  func.func @transform_3(%arg0: i32) -> (i32, i32) {
    %c0_i32 = arith.constant 0 : i32
    %c0_i32_0 = arith.constant 0 : i32
    %c0_i32_1 = arith.constant 0 : i32
    return %c0_i32, %c0_i32_0 : i32, i32
  }
  func.func @transform_4(%arg0: i32) -> (i32, i32) {
    %c0_i32 = arith.constant 0 : i32
    %c0_i32_0 = arith.constant 0 : i32
    %c0_i32_1 = arith.constant 0 : i32
    return %c0_i32, %c0_i32_0 : i32, i32
  }
  func.func @transform_5(%arg0: i32) -> (i32, i32) {
    %c0_i32 = arith.constant 0 : i32
    %c0_i32_0 = arith.constant 0 : i32
    %c0_i32_1 = arith.constant 0 : i32
    return %c0_i32, %c0_i32_0 : i32, i32
  }
  func.func @transform_6(%arg0: i32) -> (i32, i32) {
    %c0_i32 = arith.constant 0 : i32
    %c0_i32_0 = arith.constant 0 : i32
    %c0_i32_1 = arith.constant 0 : i32
    return %c0_i32, %c0_i32_0 : i32, i32
  }
  func.func @transform_7(%arg0: i32) -> (i32, i32) {
    %c0_i32 = arith.constant 0 : i32
    %c0_i32_0 = arith.constant 0 : i32
    %c0_i32_1 = arith.constant 0 : i32
    return %c0_i32, %c0_i32_0 : i32, i32
  }
  func.func @transform_8(%arg0: i32) -> (i32, i32) {
    %c0_i32 = arith.constant 0 : i32
    %c0_i32_0 = arith.constant 0 : i32
    %c0_i32_1 = arith.constant 0 : i32
    return %c0_i32, %c0_i32_0 : i32, i32
  }
  func.func @transform_9(%arg0: i32) -> (i32, i32) {
    %c0_i32 = arith.constant 0 : i32
    %c0_i32_0 = arith.constant 0 : i32
    return %c0_i32, %arg0 : i32, i32
  }
}

</mosaic_0001>

<llo_original>
// kernel: tpu_custom_call.1
$region0: #{tpu_custom_call.1}
  #allocation0 [shape = 'u32[]', space=smem, size = 0x4, offset = 0x4, fixed_abs, tag = 'smem constant byte address 0x4 - core index']
  #allocation1 [shape = 'u32[144,128]{1,0:T(1,128)}', space=vmem, size = 0x12000, scoped, tag = 'internal scratch']
  %s0 = inlined_call_operand.vmem [shape: f32[256,16], index: 0, kind: input, shape index: {}]
  %s1 = inlined_call_operand.vmem [shape: f32[32,16], index: 1, kind: input, shape index: {}]
  %s2 = inlined_call_operand.vmem [shape: f32[32,1], index: 2, kind: input, shape index: {}]
  %s3 = inlined_call_operand.vmem [shape: f32[32,32], index: 3, kind: input, shape index: {}]
  %s4 = inlined_call_operand.vmem [shape: f32[32,1], index: 4, kind: input, shape index: {}]
  %s5 = inlined_call_operand.vmem [shape: f32[32,32], index: 5, kind: input, shape index: {}]
  %s6 = inlined_call_operand.vmem [shape: f32[32,1], index: 6, kind: input, shape index: {}]
  %s7 = inlined_call_operand.vmem [shape: f32[8,32], index: 7, kind: input, shape index: {}]
  %s8 = inlined_call_operand.vmem [shape: f32[8,1], index: 8, kind: input, shape index: {}]
  %s9 = inlined_call_operand.hbm [shape: f32[8,256], index: 9, kind: output, shape index: {}]
  %s10 = sld [smem:[#allocation0]]
  $region46: #{tpu_custom_call.1} parent=0
    _
  %s12 = ssub.s32 1, %s10
  %s13 = scalar_select 0, %s12, %s10
  $region1: #{tpu_custom_call.1} parent=0
    #allocation2 [shape = 'u8[8192]{0}', space=vmem, size = 0x2000, scoped, tag = 'output window, operand 0, single buffered']
    #allocation3 [shape = 's32[1]{0}', space=sflag, size = 0x4, scoped, tag = 'scoped memory for tpu_custom_call.1']
    %14 = vsyncpa [#allocation3], 0
    // Predicated region
    $region2: #{tpu_custom_call.1} parent=1 // pred_check
      _
    $region3: #{tpu_custom_call.1} parent=1 // pred_check_branch
      %16 = sbr.rel (0) target = $region5
    $region4: #{tpu_custom_call.1} parent=1 // pred_region
      _
    $region5: #{tpu_custom_call.1} parent=1 // pred_fallthru
      _
    // Predicated region
    $region6: #{tpu_custom_call.1} parent=1 // pred_check
      _
    $region7: #{tpu_custom_call.1} parent=1 // pred_check_branch
      %18 = sbr.rel (0) target = $region9
    $region8: #{tpu_custom_call.1} parent=1 // pred_region
      _
    $region9: #{tpu_custom_call.1} parent=1 // pred_fallthru
      _
    // Predicated region
    $region10: #{tpu_custom_call.1} parent=1 // pred_check
      _
    $region11: #{tpu_custom_call.1} parent=1 // pred_check_branch
      %20 = sbr.rel (0) target = $region13
    $region12: #{tpu_custom_call.1} parent=1 // pred_region
      _
    $region13: #{tpu_custom_call.1} parent=1 // pred_fallthru
      _
    // Predicated region
    $region14: #{tpu_custom_call.1} parent=1 // pred_check
      _
    $region15: #{tpu_custom_call.1} parent=1 // pred_check_branch
      %22 = sbr.rel (0) target = $region17
    $region16: #{tpu_custom_call.1} parent=1 // pred_region
      _
    $region17: #{tpu_custom_call.1} parent=1 // pred_fallthru
      _
    // Predicated region
    $region18: #{tpu_custom_call.1} parent=1 // pred_check
      _
    $region19: #{tpu_custom_call.1} parent=1 // pred_check_branch
      %24 = sbr.rel (0) target = $region21
    $region20: #{tpu_custom_call.1} parent=1 // pred_region
      _
    $region21: #{tpu_custom_call.1} parent=1 // pred_fallthru
      _
    // Predicated region
    $region22: #{tpu_custom_call.1} parent=1 // pred_check
      _
    $region23: #{tpu_custom_call.1} parent=1 // pred_check_branch
      %26 = sbr.rel (0) target = $region25
    $region24: #{tpu_custom_call.1} parent=1 // pred_region
      _
    $region25: #{tpu_custom_call.1} parent=1 // pred_fallthru
      _
    // Predicated region
    $region26: #{tpu_custom_call.1} parent=1 // pred_check
      _
    $region27: #{tpu_custom_call.1} parent=1 // pred_check_branch
      %28 = sbr.rel (0) target = $region29
    $region28: #{tpu_custom_call.1} parent=1 // pred_region
      _
    $region29: #{tpu_custom_call.1} parent=1 // pred_fallthru
      _
    // Predicated region
    $region30: #{tpu_custom_call.1} parent=1 // pred_check
      _
    $region31: #{tpu_custom_call.1} parent=1 // pred_check_branch
      %30 = sbr.rel (0) target = $region33
    $region32: #{tpu_custom_call.1} parent=1 // pred_region
      _
    $region33: #{tpu_custom_call.1} parent=1 // pred_fallthru
      _
    // Predicated region
    $region34: #{tpu_custom_call.1} parent=1 // pred_check
      _
    $region35: #{tpu_custom_call.1} parent=1 // pred_check_branch
      %32 = sbr.rel (0) target = $region37
    $region36: #{tpu_custom_call.1} parent=1 // pred_region
      _
    $region37: #{tpu_custom_call.1} parent=1 // pred_fallthru
      _
    %v33 = vld [vmem:[%s0] sm:$0xff]
    %v34 = vld [vmem:[%s0 + $0x8] sm:$0xff]
    %v35 = vld [vmem:[%s0 + $0x10] sm:$0xff]
    %v36 = vld [vmem:[%s0 + $0x18] sm:$0xff]
    %v37 = vld [vmem:[%s0 + $0x20] sm:$0xff]
    %v38 = vld [vmem:[%s0 + $0x28] sm:$0xff]
    %v39 = vld [vmem:[%s0 + $0x30] sm:$0xff]
    %v40 = vld [vmem:[%s0 + $0x38] sm:$0xff]
    %v41 = vld [vmem:[%s0 + $0x40] sm:$0xff]
    %v42 = vld [vmem:[%s0 + $0x48] sm:$0xff]
    %v43 = vld [vmem:[%s0 + $0x50] sm:$0xff]
    %v44 = vld [vmem:[%s0 + $0x58] sm:$0xff]
    %v45 = vld [vmem:[%s0 + $0x60] sm:$0xff]
    %v46 = vld [vmem:[%s0 + $0x68] sm:$0xff]
    %v47 = vld [vmem:[%s0 + $0x70] sm:$0xff]
    %v48 = vld [vmem:[%s0 + $0x78] sm:$0xff]
    %v49 = vld [vmem:[%s0 + $0x80] sm:$0xff]
    %v50 = vld [vmem:[%s0 + $0x88] sm:$0xff]
    %v51 = vld [vmem:[%s0 + $0x90] sm:$0xff]
    %v52 = vld [vmem:[%s0 + $0x98] sm:$0xff]
    %v53 = vld [vmem:[%s0 + $0xa0] sm:$0xff]
    %v54 = vld [vmem:[%s0 + $0xa8] sm:$0xff]
    %v55 = vld [vmem:[%s0 + $0xb0] sm:$0xff]
    %v56 = vld [vmem:[%s0 + $0xb8] sm:$0xff]
    %v57 = vld [vmem:[%s0 + $0xc0] sm:$0xff]
    %v58 = vld [vmem:[%s0 + $0xc8] sm:$0xff]
    %v59 = vld [vmem:[%s0 + $0xd0] sm:$0xff]
    %v60 = vld [vmem:[%s0 + $0xd8] sm:$0xff]
    %v61 = vld [vmem:[%s0 + $0xe0] sm:$0xff]
    %v62 = vld [vmem:[%s0 + $0xe8] sm:$0xff]
    %v63 = vld [vmem:[%s0 + $0xf0] sm:$0xff]
    %v64 = vld [vmem:[%s0 + $0xf8] sm:$0xff]
    %v65 = vld [vmem:[%s1] sm:$0xff]
    %v66 = vld [vmem:[%s1 + $0x8] sm:$0xff]
    %v67 = vld [vmem:[%s1 + $0x10] sm:$0xff]
    %v68 = vld [vmem:[%s1 + $0x18] sm:$0xff]
    %v69 = vld [vmem:[%s2] sm:$0xff]
    %v70 = vld [vmem:[%s2 + $0x8] sm:$0xff]
    %v71 = vld [vmem:[%s2 + $0x10] sm:$0xff]
    %v72 = vld [vmem:[%s2 + $0x18] sm:$0xff]
    %74 = vset.pattern.permute.xlu0 0
    %75 = vperm.xlu0 %74, %v69
    %v76 = vpop.permute.xlu0 %75
    %79 = vset.pattern.permute.xlu0 0
    %80 = vperm.xlu0 %79, %v70
    %v81 = vpop.permute.xlu0 %80
    %84 = vset.pattern.permute.xlu0 0
    %85 = vperm.xlu0 %84, %v71
    %v86 = vpop.permute.xlu0 %85
    %89 = vset.pattern.permute.xlu0 0
    %90 = vperm.xlu0 %89, %v72
    %v91 = vpop.permute.xlu0 %90
    %vm93 = vcmask 130048
    %v95 = vsel %vm93, %v65, 0
    %v98 = vsel %vm93, %v66, 0
    %v101 = vsel %vm93, %v67, 0
    %v104 = vsel %vm93, %v68, 0
    %v107 = vsel %vm93, %v33, 0
    %v110 = vsel %vm93, %v34, 0
    %v113 = vsel %vm93, %v35, 0
    %v116 = vsel %vm93, %v36, 0
    %v119 = vsel %vm93, %v37, 0
    %v122 = vsel %vm93, %v38, 0
    %v125 = vsel %vm93, %v39, 0
    %v128 = vsel %vm93, %v40, 0
    %v131 = vsel %vm93, %v41, 0
    %v134 = vsel %vm93, %v42, 0
    %v137 = vsel %vm93, %v43, 0
    %v140 = vsel %vm93, %v44, 0
    %v143 = vsel %vm93, %v45, 0
    %v146 = vsel %vm93, %v46, 0
    %v149 = vsel %vm93, %v47, 0
    %v152 = vsel %vm93, %v48, 0
    %v155 = vsel %vm93, %v49, 0
    %v158 = vsel %vm93, %v50, 0
    %v161 = vsel %vm93, %v51, 0
    %v164 = vsel %vm93, %v52, 0
    %v167 = vsel %vm93, %v53, 0
    %v170 = vsel %vm93, %v54, 0
    %v173 = vsel %vm93, %v55, 0
    %v176 = vsel %vm93, %v56, 0
    %v179 = vsel %vm93, %v57, 0
    %v182 = vsel %vm93, %v58, 0
    %v185 = vsel %vm93, %v59, 0
    %v188 = vsel %vm93, %v60, 0
    %v191 = vsel %vm93, %v61, 0
    %v194 = vsel %vm93, %v62, 0
    %v197 = vsel %vm93, %v63, 0
    %v200 = vsel %vm93, %v64, 0
    %202 = vmatprep.subr.mxu0 0.0
    %203 = vmatpush1.xpose.msra.mxu0 %v107
    %204 = vmatprep.subr.mxu0 0.0
    %205 = vmatpush1.xpose.msra.mxu0 %v110
    %206 = vmatprep.subr.mxu0 0.0
    %207 = vmatpush1.xpose.msra.mxu0 %v113
    %208 = vmatprep.subr.mxu0 0.0
    %209 = vmatpush1.xpose.msra.mxu0 %v116
    %210 = vmatprep.subr.mxu0 0.0
    %211 = vmatpush1.xpose.msra.mxu0 %v119
    %212 = vmatprep.subr.mxu0 0.0
    %213 = vmatpush1.xpose.msra.mxu0 %v122
    %214 = vmatprep.subr.mxu0 0.0
    %215 = vmatpush1.xpose.msra.mxu0 %v125
    %216 = vmatprep.subr.mxu0 0.0
    %217 = vmatpush1.xpose.msra.mxu0 %v128
    %218 = vmatprep.subr.mxu0 0.0
    %219 = vmatpush1.xpose.msra.mxu0 %v131
    %220 = vmatprep.subr.mxu0 0.0
    %221 = vmatpush1.xpose.msra.mxu0 %v134
    %222 = vmatprep.subr.mxu0 0.0
    %223 = vmatpush1.xpose.msra.mxu0 %v137
    %224 = vmatprep.subr.mxu0 0.0
    %225 = vmatpush1.xpose.msra.mxu0 %v140
    %226 = vmatprep.subr.mxu0 0.0
    %227 = vmatpush1.xpose.msra.mxu0 %v143
    %228 = vmatprep.subr.mxu0 0.0
    %229 = vmatpush1.xpose.msra.mxu0 %v146
    %230 = vmatprep.subr.mxu0 0.0
    %231 = vmatpush1.xpose.msra.mxu0 %v149
    %232 = vmatprep.subr.mxu0 0.0
    %233 = vmatpush1.xpose.msra.mxu0 %v152
    %234 = vmatprep.subr.mxu0 0.0
    %235 = vmatpush1.xpose.msra.mxu0 %v155
    %236 = vmatprep.subr.mxu0 0.0
    %237 = vmatpush1.xpose.msra.mxu0 %v158
    %238 = vmatprep.subr.mxu0 0.0
    %239 = vmatpush1.xpose.msra.mxu0 %v161
    %240 = vmatprep.subr.mxu0 0.0
    %241 = vmatpush1.xpose.msra.mxu0 %v164
    %242 = vmatprep.subr.mxu0 0.0
    %243 = vmatpush1.xpose.msra.mxu0 %v167
    %244 = vmatprep.subr.mxu0 0.0
    %245 = vmatpush1.xpose.msra.mxu0 %v170
    %246 = vmatprep.subr.mxu0 0.0
    %247 = vmatpush1.xpose.msra.mxu0 %v173
    %248 = vmatprep.subr.mxu0 0.0
    %249 = vmatpush1.xpose.msra.mxu0 %v176
    %250 = vmatprep.subr.mxu0 0.0
    %251 = vmatpush1.xpose.msra.mxu0 %v179
    %252 = vmatprep.subr.mxu0 0.0
    %253 = vmatpush1.xpose.msra.mxu0 %v182
    %254 = vmatprep.subr.mxu0 0.0
    %255 = vmatpush1.xpose.msra.mxu0 %v185
    %256 = vmatprep.subr.mxu0 0.0
    %257 = vmatpush1.xpose.msra.mxu0 %v188
    %258 = vmatprep.subr.mxu0 0.0
    %259 = vmatpush1.xpose.msra.mxu0 %v191
    %260 = vmatprep.subr.mxu0 0.0
    %261 = vmatpush1.xpose.msra.mxu0 %v194
    %262 = vmatprep.subr.mxu0 0.0
    %263 = vmatpush1.xpose.msra.mxu0 %v197
    %264 = vmatprep.subr.mxu0 0.0
    %265 = vmatpush1.xpose.msra.mxu0 %v200
    %266 = vmatprep.mubr.f32.mxu0 0.0
    %267 = vmatmul.mubr.f32.gmra.mrb[0].mxu0 %v95
    %v268 = vpop.f32.mrb[0].mxu0
    %v269 = vadd.f32 %v76, %v268
    %v270 = vpop.f32.mrb[0].mxu0
    %v271 = vadd.f32 %v76, %v270
    %272 = vmatprep.mubr.f32.mxu0 0.0
    %273 = vmatmul.mubr.f32.gmra.mrb[0].mxu0 %v98
    %v274 = vpop.f32.mrb[0].mxu0
    %v275 = vadd.f32 %v81, %v274
    %v276 = vpop.f32.mrb[0].mxu0
    %v277 = vadd.f32 %v81, %v276
    %278 = vmatprep.mubr.f32.mxu0 0.0
    %279 = vmatmul.mubr.f32.gmra.mrb[0].mxu0 %v101
    %v280 = vpop.f32.mrb[0].mxu0
    %v281 = vadd.f32 %v86, %v280
    %v282 = vpop.f32.mrb[0].mxu0
    %v283 = vadd.f32 %v86, %v282
    %284 = vmatprep.mubr.f32.mxu0 0.0
    %285 = vmatmul.mubr.f32.gmra.mrb[0].mxu0 %v104
    %v286 = vpop.f32.mrb[0].mxu0
    %v287 = vadd.f32 %v91, %v286
    %v288 = vpop.f32.mrb[0].mxu0
    %v289 = vadd.f32 %v91, %v288
    %290 = vdwg.mxu0
    %v291 = vand.u32 2147483647, %v269
    %v292 = vand.u32 2147483647, %v271
    %v293 = vand.u32 2147483647, %v275
    %v294 = vand.u32 2147483647, %v277
    %v295 = vand.u32 2147483647, %v281
    %v296 = vand.u32 2147483647, %v283
    %v297 = vand.u32 2147483647, %v287
    %v298 = vand.u32 2147483647, %v289
    %v299 = vsub.f32 0.0, %v291
    %v300 = vsub.f32 0.0, %v292
    %v301 = vsub.f32 0.0, %v293
    %v302 = vsub.f32 0.0, %v294
    %v303 = vsub.f32 0.0, %v295
    %v304 = vsub.f32 0.0, %v296
    %v305 = vsub.f32 0.0, %v297
    %v306 = vsub.f32 0.0, %v298
    %v307 = vmul.f32 %v299, 1.442695
    %v308 = vpow.pop %v307
    %v309 = vmul.f32 %v300, 1.442695
    %v310 = vpow.pop %v309
    %v311 = vmul.f32 %v301, 1.442695
    %v312 = vpow.pop %v311
    %v313 = vmul.f32 %v302, 1.442695
    %v314 = vpow.pop %v313
    %v315 = vmul.f32 %v303, 1.442695
    %v316 = vpow.pop %v315
    %v317 = vmul.f32 %v304, 1.442695
    %v318 = vpow.pop %v317
    %v319 = vmul.f32 %v305, 1.442695
    %v320 = vpow.pop %v319
    %v321 = vmul.f32 %v306, 1.442695
    %v322 = vpow.pop %v321
    %v323 = vadd.f32 %v308, 1.0
    %v324 = vlog2.pop %v323
    %v325 = vmul.f32 %v324, 0.6931472
    %v326 = vmul.f32 -0.5, %v308
    %v327 = vadd.f32 %v326, 1.0
    %v328 = vmul.f32 %v327, %v308
    %v329 = vand.u32 2147483647, %v308
    %vm330 = vcmp.lt.f32.partialorder %v329, 0.0004427343
    %v331 = vsel %vm330, %v328, %v325
    %v332 = vadd.f32 %v310, 1.0
    %v333 = vlog2.pop %v332
    %v334 = vmul.f32 %v333, 0.6931472
    %v335 = vmul.f32 -0.5, %v310
    %v336 = vadd.f32 %v335, 1.0
    %v337 = vmul.f32 %v336, %v310
    %v338 = vand.u32 2147483647, %v310
    %vm339 = vcmp.lt.f32.partialorder %v338, 0.0004427343
    %v340 = vsel %vm339, %v337, %v334
    %v341 = vadd.f32 %v312, 1.0
    %v342 = vlog2.pop %v341
    %v343 = vmul.f32 %v342, 0.6931472
    %v344 = vmul.f32 -0.5, %v312
    %v345 = vadd.f32 %v344, 1.0
    %v346 = vmul.f32 %v345, %v312
    %v347 = vand.u32 2147483647, %v312
    %vm348 = vcmp.lt.f32.partialorder %v347, 0.0004427343
    %v349 = vsel %vm348, %v346, %v343
    %v350 = vadd.f32 %v314, 1.0
    %v351 = vlog2.pop %v350
    %v352 = vmul.f32 %v351, 0.6931472
    %v353 = vmul.f32 -0.5, %v314
    %v354 = vadd.f32 %v353, 1.0
    %v355 = vmul.f32 %v354, %v314
    %v356 = vand.u32 2147483647, %v314
    %vm357 = vcmp.lt.f32.partialorder %v356, 0.0004427343
    %v358 = vsel %vm357, %v355, %v352
    %v359 = vadd.f32 %v316, 1.0
    %v360 = vlog2.pop %v359
    %v361 = vmul.f32 %v360, 0.6931472
    %v362 = vmul.f32 -0.5, %v316
    %v363 = vadd.f32 %v362, 1.0
    %v364 = vmul.f32 %v363, %v316
    %v365 = vand.u32 2147483647, %v316
    %vm366 = vcmp.lt.f32.partialorder %v365, 0.0004427343
    %v367 = vsel %vm366, %v364, %v361
    %v368 = vadd.f32 %v318, 1.0
    %v369 = vlog2.pop %v368
    %v370 = vmul.f32 %v369, 0.6931472
    %v371 = vmul.f32 -0.5, %v318
    %v372 = vadd.f32 %v371, 1.0
    %v373 = vmul.f32 %v372, %v318
    %v374 = vand.u32 2147483647, %v318
    %vm375 = vcmp.lt.f32.partialorder %v374, 0.0004427343
    %v376 = vsel %vm375, %v373, %v370
    %v377 = vadd.f32 %v320, 1.0
    %v378 = vlog2.pop %v377
    %v379 = vmul.f32 %v378, 0.6931472
    %v380 = vmul.f32 -0.5, %v320
    %v381 = vadd.f32 %v380, 1.0
    %v382 = vmul.f32 %v381, %v320
    %v383 = vand.u32 2147483647, %v320
    %vm384 = vcmp.lt.f32.partialorder %v383, 0.0004427343
    %v385 = vsel %vm384, %v382, %v379
    %v386 = vadd.f32 %v322, 1.0
    %v387 = vlog2.pop %v386
    %v388 = vmul.f32 %v387, 0.6931472
    %v389 = vmul.f32 -0.5, %v322
    %v390 = vadd.f32 %v389, 1.0
    %v391 = vmul.f32 %v390, %v322
    %v392 = vand.u32 2147483647, %v322
    %vm393 = vcmp.lt.f32.partialorder %v392, 0.0004427343
    %v394 = vsel %vm393, %v391, %v388
    %v395 = vmax.f32 %v269, 0.0
    %v396 = vmax.f32 %v271, 0.0
    %v397 = vmax.f32 %v275, 0.0
    %v398 = vmax.f32 %v277, 0.0
    %v399 = vmax.f32 %v281, 0.0
    %v400 = vmax.f32 %v283, 0.0
    %v401 = vmax.f32 %v287, 0.0
    %v402 = vmax.f32 %v289, 0.0
    %v403 = vadd.f32 %v395, %v331
    %v404 = vadd.f32 %v396, %v340
    %v405 = vadd.f32 %v397, %v349
    %v406 = vadd.f32 %v398, %v358
    %v407 = vadd.f32 %v399, %v367
    %v408 = vadd.f32 %v400, %v376
    %v409 = vadd.f32 %v401, %v385
    %v410 = vadd.f32 %v402, %v394
    %v411 = vld [vmem:[%s3] sm:$0xff]
    %v412 = vld [vmem:[%s3 + $0x8] sm:$0xff]
    %v413 = vld [vmem:[%s3 + $0x10] sm:$0xff]
    %v414 = vld [vmem:[%s3 + $0x18] sm:$0xff]
    %v415 = vld [vmem:[%s4] sm:$0xff]
    %v416 = vld [vmem:[%s4 + $0x8] sm:$0xff]
    %v417 = vld [vmem:[%s4 + $0x10] sm:$0xff]
    %v418 = vld [vmem:[%s4 + $0x18] sm:$0xff]
    %420 = vset.pattern.permute.xlu0 0
    %421 = vperm.xlu0 %420, %v415
    %v422 = vpop.permute.xlu0 %421
    %425 = vset.pattern.permute.xlu0 0
    %426 = vperm.xlu0 %425, %v416
    %v427 = vpop.permute.xlu0 %426
    %430 = vset.pattern.permute.xlu0 0
    %431 = vperm.xlu0 %430, %v417
    %v432 = vpop.permute.xlu0 %431
    %435 = vset.pattern.permute.xlu0 0
    %436 = vperm.xlu0 %435, %v418
    %v437 = vpop.permute.xlu0 %436
    %vm439 = vcmask 261120
    %v441 = vsel %vm439, %v411, 0
    %v444 = vsel %vm439, %v412, 0
    %v447 = vsel %vm439, %v413, 0
    %v450 = vsel %vm439, %v414, 0
    %452 = vmatprep.subr.mxu0 %v404
    %453 = vmatpush1.msra.mxu0 %v403
    %454 = vmatprep.subr.mxu0 %v406
    %455 = vmatpush1.msra.mxu0 %v405
    %456 = vmatprep.subr.mxu0 %v408
    %457 = vmatpush1.msra.mxu0 %v407
    %458 = vmatprep.subr.mxu0 %v410
    %459 = vmatpush1.msra.mxu0 %v409
    %460 = vmatprep.subr.mxu0 0.0
    %461 = vmatpush1.msra.mxu0 0.0
    %462 = vmatprep.subr.mxu0 0.0
    %463 = vmatpush1.msra.mxu0 0.0
    %464 = vmatprep.subr.mxu0 0.0
    %465 = vmatpush1.msra.mxu0 0.0
    %466 = vmatprep.subr.mxu0 0.0
    %467 = vmatpush1.msra.mxu0 0.0
    %468 = vmatprep.subr.mxu0 0.0
    %469 = vmatpush1.msra.mxu0 0.0
    %470 = vmatprep.subr.mxu0 0.0
    %471 = vmatpush1.msra.mxu0 0.0
    %472 = vmatprep.subr.mxu0 0.0
    %473 = vmatpush1.msra.mxu0 0.0
    %474 = vmatprep.subr.mxu0 0.0
    %475 = vmatpush1.msra.mxu0 0.0
    %476 = vmatprep.subr.mxu0 0.0
    %477 = vmatpush1.msra.mxu0 0.0
    %478 = vmatprep.subr.mxu0 0.0
    %479 = vmatpush1.msra.mxu0 0.0
    %480 = vmatprep.subr.mxu0 0.0
    %481 = vmatpush1.msra.mxu0 0.0
    %482 = vmatprep.subr.mxu0 0.0
    %483 = vmatpush1.msra.mxu0 0.0
    %484 = vmatprep.subr.mxu0 0.0
    %485 = vmatpush1.msra.mxu0 0.0
    %486 = vmatprep.subr.mxu0 0.0
    %487 = vmatpush1.msra.mxu0 0.0
    %488 = vmatprep.subr.mxu0 0.0
    %489 = vmatpush1.msra.mxu0 0.0
    %490 = vmatprep.subr.mxu0 0.0
    %491 = vmatpush1.msra.mxu0 0.0
    %492 = vmatprep.subr.mxu0 0.0
    %493 = vmatpush1.msra.mxu0 0.0
    %494 = vmatprep.subr.mxu0 0.0
    %495 = vmatpush1.msra.mxu0 0.0
    %496 = vmatprep.subr.mxu0 0.0
    %497 = vmatpush1.msra.mxu0 0.0
    %498 = vmatprep.subr.mxu0 0.0
    %499 = vmatpush1.msra.mxu0 0.0
    %500 = vmatprep.subr.mxu0 0.0
    %501 = vmatpush1.msra.mxu0 0.0
    %502 = vmatprep.subr.mxu0 0.0
    %503 = vmatpush1.msra.mxu0 0.0
    %504 = vmatprep.subr.mxu0 0.0
    %505 = vmatpush1.msra.mxu0 0.0
    %506 = vmatprep.subr.mxu0 0.0
    %507 = vmatpush1.msra.mxu0 0.0
    %508 = vmatprep.subr.mxu0 0.0
    %509 = vmatpush1.msra.mxu0 0.0
    %510 = vmatprep.subr.mxu0 0.0
    %511 = vmatpush1.msra.mxu0 0.0
    %512 = vmatprep.subr.mxu0 0.0
    %513 = vmatpush1.msra.mxu0 0.0
    %514 = vmatprep.subr.mxu0 0.0
    %515 = vmatpush1.msra.mxu0 0.0
    %516 = vmatprep.mubr.f32.mxu0 0.0
    %517 = vmatmul.mubr.f32.gmra.mrb[0].mxu0 %v441
    %v518 = vpop.f32.mrb[0].mxu0
    %v519 = vadd.f32 %v422, %v518
    %v520 = vpop.f32.mrb[0].mxu0
    %v521 = vadd.f32 %v422, %v520
    %522 = vmatprep.mubr.f32.mxu0 0.0
    %523 = vmatmul.mubr.f32.gmra.mrb[0].mxu0 %v444
    %v524 = vpop.f32.mrb[0].mxu0
    %v525 = vadd.f32 %v427, %v524
    %v526 = vpop.f32.mrb[0].mxu0
    %v527 = vadd.f32 %v427, %v526
    %528 = vmatprep.mubr.f32.mxu0 0.0
    %529 = vmatmul.mubr.f32.gmra.mrb[0].mxu0 %v447
    %v530 = vpop.f32.mrb[0].mxu0
    %v531 = vadd.f32 %v432, %v530
    %v532 = vpop.f32.mrb[0].mxu0
    %v533 = vadd.f32 %v432, %v532
    %534 = vmatprep.mubr.f32.mxu0 0.0
    %535 = vmatmul.mubr.f32.gmra.mrb[0].mxu0 %v450
    %v536 = vpop.f32.mrb[0].mxu0
    %v537 = vadd.f32 %v437, %v536
    %v538 = vpop.f32.mrb[0].mxu0
    %v539 = vadd.f32 %v437, %v538
    %540 = vdwg.mxu0
    %v541 = vand.u32 2147483647, %v519
    %v542 = vand.u32 2147483647, %v521
    %v543 = vand.u32 2147483647, %v525
    %v544 = vand.u32 2147483647, %v527
    %v545 = vand.u32 2147483647, %v531
    %v546 = vand.u32 2147483647, %v533
    %v547 = vand.u32 2147483647, %v537
    %v548 = vand.u32 2147483647, %v539
    %v549 = vsub.f32 0.0, %v541
    %v550 = vsub.f32 0.0, %v542
    %v551 = vsub.f32 0.0, %v543
    %v552 = vsub.f32 0.0, %v544
    %v553 = vsub.f32 0.0, %v545
    %v554 = vsub.f32 0.0, %v546
    %v555 = vsub.f32 0.0, %v547
    %v556 = vsub.f32 0.0, %v548
    %v557 = vmul.f32 %v549, 1.442695
    %v558 = vpow.pop %v557
    %v559 = vmul.f32 %v550, 1.442695
    %v560 = vpow.pop %v559
    %v561 = vmul.f32 %v551, 1.442695
    %v562 = vpow.pop %v561
    %v563 = vmul.f32 %v552, 1.442695
    %v564 = vpow.pop %v563
    %v565 = vmul.f32 %v553, 1.442695
    %v566 = vpow.pop %v565
    %v567 = vmul.f32 %v554, 1.442695
    %v568 = vpow.pop %v567
    %v569 = vmul.f32 %v555, 1.442695
    %v570 = vpow.pop %v569
    %v571 = vmul.f32 %v556, 1.442695
    %v572 = vpow.pop %v571
    %v573 = vadd.f32 %v558, 1.0
    %v574 = vlog2.pop %v573
    %v575 = vmul.f32 %v574, 0.6931472
    %v576 = vmul.f32 -0.5, %v558
    %v577 = vadd.f32 %v576, 1.0
    %v578 = vmul.f32 %v577, %v558
    %v579 = vand.u32 2147483647, %v558
    %vm580 = vcmp.lt.f32.partialorder %v579, 0.0004427343
    %v581 = vsel %vm580, %v578, %v575
    %v582 = vadd.f32 %v560, 1.0
    %v583 = vlog2.pop %v582
    %v584 = vmul.f32 %v583, 0.6931472
    %v585 = vmul.f32 -0.5, %v560
    %v586 = vadd.f32 %v585, 1.0
    %v587 = vmul.f32 %v586, %v560
    %v588 = vand.u32 2147483647, %v560
    %vm589 = vcmp.lt.f32.partialorder %v588, 0.0004427343
    %v590 = vsel %vm589, %v587, %v584
    %v591 = vadd.f32 %v562, 1.0
    %v592 = vlog2.pop %v591
    %v593 = vmul.f32 %v592, 0.6931472
    %v594 = vmul.f32 -0.5, %v562
    %v595 = vadd.f32 %v594, 1.0
    %v596 = vmul.f32 %v595, %v562
    %v597 = vand.u32 2147483647, %v562
    %vm598 = vcmp.lt.f32.partialorder %v597, 0.0004427343
    %v599 = vsel %vm598, %v596, %v593
    %v600 = vadd.f32 %v564, 1.0
    %v601 = vlog2.pop %v600
    %v602 = vmul.f32 %v601, 0.6931472
    %v603 = vmul.f32 -0.5, %v564
    %v604 = vadd.f32 %v603, 1.0
    %v605 = vmul.f32 %v604, %v564
    %v606 = vand.u32 2147483647, %v564
    %vm607 = vcmp.lt.f32.partialorder %v606, 0.0004427343
    %v608 = vsel %vm607, %v605, %v602
    %v609 = vadd.f32 %v566, 1.0
    %v610 = vlog2.pop %v609
    %v611 = vmul.f32 %v610, 0.6931472
    %v612 = vmul.f32 -0.5, %v566
    %v613 = vadd.f32 %v612, 1.0
    %v614 = vmul.f32 %v613, %v566
    %v615 = vand.u32 2147483647, %v566
    %vm616 = vcmp.lt.f32.partialorder %v615, 0.0004427343
    %v617 = vsel %vm616, %v614, %v611
    %v618 = vadd.f32 %v568, 1.0
    %v619 = vlog2.pop %v618
    %v620 = vmul.f32 %v619, 0.6931472
    %v621 = vmul.f32 -0.5, %v568
    %v622 = vadd.f32 %v621, 1.0
    %v623 = vmul.f32 %v622, %v568
    %v624 = vand.u32 2147483647, %v568
    %vm625 = vcmp.lt.f32.partialorder %v624, 0.0004427343
    %v626 = vsel %vm625, %v623, %v620
    %v627 = vadd.f32 %v570, 1.0
    %v628 = vlog2.pop %v627
    %v629 = vmul.f32 %v628, 0.6931472
    %v630 = vmul.f32 -0.5, %v570
    %v631 = vadd.f32 %v630, 1.0
    %v632 = vmul.f32 %v631, %v570
    %v633 = vand.u32 2147483647, %v570
    %vm634 = vcmp.lt.f32.partialorder %v633, 0.0004427343
    %v635 = vsel %vm634, %v632, %v629
    %v636 = vadd.f32 %v572, 1.0
    %v637 = vlog2.pop %v636
    %v638 = vmul.f32 %v637, 0.6931472
    %v639 = vmul.f32 -0.5, %v572
    %v640 = vadd.f32 %v639, 1.0
    %v641 = vmul.f32 %v640, %v572
    %v642 = vand.u32 2147483647, %v572
    %vm643 = vcmp.lt.f32.partialorder %v642, 0.0004427343
    %v644 = vsel %vm643, %v641, %v638
    %v645 = vmax.f32 %v519, 0.0
    %v646 = vmax.f32 %v521, 0.0
    %v647 = vmax.f32 %v525, 0.0
    %v648 = vmax.f32 %v527, 0.0
    %v649 = vmax.f32 %v531, 0.0
    %v650 = vmax.f32 %v533, 0.0
    %v651 = vmax.f32 %v537, 0.0
    %v652 = vmax.f32 %v539, 0.0
    %v653 = vadd.f32 %v645, %v581
    %v654 = vadd.f32 %v646, %v590
    %v655 = vadd.f32 %v647, %v599
    %v656 = vadd.f32 %v648, %v608
    %v657 = vadd.f32 %v649, %v617
    %v658 = vadd.f32 %v650, %v626
    %v659 = vadd.f32 %v651, %v635
    %v660 = vadd.f32 %v652, %v644
    %v661 = vld [vmem:[%s5] sm:$0xff]
    %v662 = vld [vmem:[%s5 + $0x8] sm:$0xff]
    %v663 = vld [vmem:[%s5 + $0x10] sm:$0xff]
    %v664 = vld [vmem:[%s5 + $0x18] sm:$0xff]
    %v665 = vld [vmem:[%s6] sm:$0xff]
    %v666 = vld [vmem:[%s6 + $0x8] sm:$0xff]
    %v667 = vld [vmem:[%s6 + $0x10] sm:$0xff]
    %v668 = vld [vmem:[%s6 + $0x18] sm:$0xff]
    %670 = vset.pattern.permute.xlu0 0
    %671 = vperm.xlu0 %670, %v665
    %v672 = vpop.permute.xlu0 %671
    %675 = vset.pattern.permute.xlu0 0
    %676 = vperm.xlu0 %675, %v666
    %v677 = vpop.permute.xlu0 %676
    %680 = vset.pattern.permute.xlu0 0
    %681 = vperm.xlu0 %680, %v667
    %v682 = vpop.permute.xlu0 %681
    %685 = vset.pattern.permute.xlu0 0
    %686 = vperm.xlu0 %685, %v668
    %v687 = vpop.permute.xlu0 %686
    %v690 = vsel %vm439, %v661, 0
    %v693 = vsel %vm439, %v662, 0
    %v696 = vsel %vm439, %v663, 0
    %v699 = vsel %vm439, %v664, 0
    %701 = vmatprep.subr.mxu0 %v654
    %702 = vmatpush1.msra.mxu0 %v653
    %703 = vmatprep.subr.mxu0 %v656
    %704 = vmatpush1.msra.mxu0 %v655
    %705 = vmatprep.subr.mxu0 %v658
    %706 = vmatpush1.msra.mxu0 %v657
    %707 = vmatprep.subr.mxu0 %v660
    %708 = vmatpush1.msra.mxu0 %v659
    %709 = vmatprep.subr.mxu0 0.0
    %710 = vmatpush1.msra.mxu0 0.0
    %711 = vmatprep.subr.mxu0 0.0
    %712 = vmatpush1.msra.mxu0 0.0
    %713 = vmatprep.subr.mxu0 0.0
    %714 = vmatpush1.msra.mxu0 0.0
    %715 = vmatprep.subr.mxu0 0.0
    %716 = vmatpush1.msra.mxu0 0.0
    %717 = vmatprep.subr.mxu0 0.0
    %718 = vmatpush1.msra.mxu0 0.0
    %719 = vmatprep.subr.mxu0 0.0
    %720 = vmatpush1.msra.mxu0 0.0
    %721 = vmatprep.subr.mxu0 0.0
    %722 = vmatpush1.msra.mxu0 0.0
    %723 = vmatprep.subr.mxu0 0.0
    %724 = vmatpush1.msra.mxu0 0.0
    %725 = vmatprep.subr.mxu0 0.0
    %726 = vmatpush1.msra.mxu0 0.0
    %727 = vmatprep.subr.mxu0 0.0
    %728 = vmatpush1.msra.mxu0 0.0
    %729 = vmatprep.subr.mxu0 0.0
    %730 = vmatpush1.msra.mxu0 0.0
    %731 = vmatprep.subr.mxu0 0.0
    %732 = vmatpush1.msra.mxu0 0.0
    %733 = vmatprep.subr.mxu0 0.0
    %734 = vmatpush1.msra.mxu0 0.0
    %735 = vmatprep.subr.mxu0 0.0
    %736 = vmatpush1.msra.mxu0 0.0
    %737 = vmatprep.subr.mxu0 0.0
    %738 = vmatpush1.msra.mxu0 0.0
    %739 = vmatprep.subr.mxu0 0.0
    %740 = vmatpush1.msra.mxu0 0.0
    %741 = vmatprep.subr.mxu0 0.0
    %742 = vmatpush1.msra.mxu0 0.0
    %743 = vmatprep.subr.mxu0 0.0
    %744 = vmatpush1.msra.mxu0 0.0
    %745 = vmatprep.subr.mxu0 0.0
    %746 = vmatpush1.msra.mxu0 0.0
    %747 = vmatprep.subr.mxu0 0.0
    %748 = vmatpush1.msra.mxu0 0.0
    %749 = vmatprep.subr.mxu0 0.0
    %750 = vmatpush1.msra.mxu0 0.0
    %751 = vmatprep.subr.mxu0 0.0
    %752 = vmatpush1.msra.mxu0 0.0
    %753 = vmatprep.subr.mxu0 0.0
    %754 = vmatpush1.msra.mxu0 0.0
    %755 = vmatprep.subr.mxu0 0.0
    %756 = vmatpush1.msra.mxu0 0.0
    %757 = vmatprep.subr.mxu0 0.0
    %758 = vmatpush1.msra.mxu0 0.0
    %759 = vmatprep.subr.mxu0 0.0
    %760 = vmatpush1.msra.mxu0 0.0
    %761 = vmatprep.subr.mxu0 0.0
    %762 = vmatpush1.msra.mxu0 0.0
    %763 = vmatprep.subr.mxu0 0.0
    %764 = vmatpush1.msra.mxu0 0.0
    %765 = vmatprep.mubr.f32.mxu0 0.0
    %766 = vmatmul.mubr.f32.gmra.mrb[0].mxu0 %v690
    %v767 = vpop.f32.mrb[0].mxu0
    %v768 = vadd.f32 %v672, %v767
    %v769 = vpop.f32.mrb[0].mxu0
    %v770 = vadd.f32 %v672, %v769
    %771 = vmatprep.mubr.f32.mxu0 0.0
    %772 = vmatmul.mubr.f32.gmra.mrb[0].mxu0 %v693
    %v773 = vpop.f32.mrb[0].mxu0
    %v774 = vadd.f32 %v677, %v773
    %v775 = vpop.f32.mrb[0].mxu0
    %v776 = vadd.f32 %v677, %v775
    %777 = vmatprep.mubr.f32.mxu0 0.0
    %778 = vmatmul.mubr.f32.gmra.mrb[0].mxu0 %v696
    %v779 = vpop.f32.mrb[0].mxu0
    %v780 = vadd.f32 %v682, %v779
    %v781 = vpop.f32.mrb[0].mxu0
    %v782 = vadd.f32 %v682, %v781
    %783 = vmatprep.mubr.f32.mxu0 0.0
    %784 = vmatmul.mubr.f32.gmra.mrb[0].mxu0 %v699
    %v785 = vpop.f32.mrb[0].mxu0
    %v786 = vadd.f32 %v687, %v785
    %v787 = vpop.f32.mrb[0].mxu0
    %v788 = vadd.f32 %v687, %v787
    %789 = vdwg.mxu0
    %v790 = vand.u32 2147483647, %v768
    %v791 = vand.u32 2147483647, %v770
    %v792 = vand.u32 2147483647, %v774
    %v793 = vand.u32 2147483647, %v776
    %v794 = vand.u32 2147483647, %v780
    %v795 = vand.u32 2147483647, %v782
    %v796 = vand.u32 2147483647, %v786
    %v797 = vand.u32 2147483647, %v788
    %v798 = vsub.f32 0.0, %v790
    %v799 = vsub.f32 0.0, %v791
    %v800 = vsub.f32 0.0, %v792
    %v801 = vsub.f32 0.0, %v793
    %v802 = vsub.f32 0.0, %v794
    %v803 = vsub.f32 0.0, %v795
    %v804 = vsub.f32 0.0, %v796
    %v805 = vsub.f32 0.0, %v797
    %v806 = vmul.f32 %v798, 1.442695
    %v807 = vpow.pop %v806
    %v808 = vmul.f32 %v799, 1.442695
    %v809 = vpow.pop %v808
    %v810 = vmul.f32 %v800, 1.442695
    %v811 = vpow.pop %v810
    %v812 = vmul.f32 %v801, 1.442695
    %v813 = vpow.pop %v812
    %v814 = vmul.f32 %v802, 1.442695
    %v815 = vpow.pop %v814
    %v816 = vmul.f32 %v803, 1.442695
    %v817 = vpow.pop %v816
    %v818 = vmul.f32 %v804, 1.442695
    %v819 = vpow.pop %v818
    %v820 = vmul.f32 %v805, 1.442695
    %v821 = vpow.pop %v820
    %v822 = vadd.f32 %v807, 1.0
    %v823 = vlog2.pop %v822
    %v824 = vmul.f32 %v823, 0.6931472
    %v825 = vmul.f32 -0.5, %v807
    %v826 = vadd.f32 %v825, 1.0
    %v827 = vmul.f32 %v826, %v807
    %v828 = vand.u32 2147483647, %v807
    %vm829 = vcmp.lt.f32.partialorder %v828, 0.0004427343
    %v830 = vsel %vm829, %v827, %v824
    %v831 = vadd.f32 %v809, 1.0
    %v832 = vlog2.pop %v831
    %v833 = vmul.f32 %v832, 0.6931472
    %v834 = vmul.f32 -0.5, %v809
    %v835 = vadd.f32 %v834, 1.0
    %v836 = vmul.f32 %v835, %v809
    %v837 = vand.u32 2147483647, %v809
    %vm838 = vcmp.lt.f32.partialorder %v837, 0.0004427343
    %v839 = vsel %vm838, %v836, %v833
    %v840 = vadd.f32 %v811, 1.0
    %v841 = vlog2.pop %v840
    %v842 = vmul.f32 %v841, 0.6931472
    %v843 = vmul.f32 -0.5, %v811
    %v844 = vadd.f32 %v843, 1.0
    %v845 = vmul.f32 %v844, %v811
    %v846 = vand.u32 2147483647, %v811
    %vm847 = vcmp.lt.f32.partialorder %v846, 0.0004427343
    %v848 = vsel %vm847, %v845, %v842
    %v849 = vadd.f32 %v813, 1.0
    %v850 = vlog2.pop %v849
    %v851 = vmul.f32 %v850, 0.6931472
    %v852 = vmul.f32 -0.5, %v813
    %v853 = vadd.f32 %v852, 1.0
    %v854 = vmul.f32 %v853, %v813
    %v855 = vand.u32 2147483647, %v813
    %vm856 = vcmp.lt.f32.partialorder %v855, 0.0004427343
    %v857 = vsel %vm856, %v854, %v851
    %v858 = vadd.f32 %v815, 1.0
    %v859 = vlog2.pop %v858
    %v860 = vmul.f32 %v859, 0.6931472
    %v861 = vmul.f32 -0.5, %v815
    %v862 = vadd.f32 %v861, 1.0
    %v863 = vmul.f32 %v862, %v815
    %v864 = vand.u32 2147483647, %v815
    %vm865 = vcmp.lt.f32.partialorder %v864, 0.0004427343
    %v866 = vsel %vm865, %v863, %v860
    %v867 = vadd.f32 %v817, 1.0
    %v868 = vlog2.pop %v867
    %v869 = vmul.f32 %v868, 0.6931472
    %v870 = vmul.f32 -0.5, %v817
    %v871 = vadd.f32 %v870, 1.0
    %v872 = vmul.f32 %v871, %v817
    %v873 = vand.u32 2147483647, %v817
    %vm874 = vcmp.lt.f32.partialorder %v873, 0.0004427343
    %v875 = vsel %vm874, %v872, %v869
    %v876 = vadd.f32 %v819, 1.0
    %v877 = vlog2.pop %v876
    %v878 = vmul.f32 %v877, 0.6931472
    %v879 = vmul.f32 -0.5, %v819
    %v880 = vadd.f32 %v879, 1.0
    %v881 = vmul.f32 %v880, %v819
    %v882 = vand.u32 2147483647, %v819
    %vm883 = vcmp.lt.f32.partialorder %v882, 0.0004427343
    %v884 = vsel %vm883, %v881, %v878
    %v885 = vadd.f32 %v821, 1.0
    %v886 = vlog2.pop %v885
    %v887 = vmul.f32 %v886, 0.6931472
    %v888 = vmul.f32 -0.5, %v821
    %v889 = vadd.f32 %v888, 1.0
    %v890 = vmul.f32 %v889, %v821
    %v891 = vand.u32 2147483647, %v821
    %vm892 = vcmp.lt.f32.partialorder %v891, 0.0004427343
    %v893 = vsel %vm892, %v890, %v887
    %v894 = vmax.f32 %v768, 0.0
    %v895 = vmax.f32 %v770, 0.0
    %v896 = vmax.f32 %v774, 0.0
    %v897 = vmax.f32 %v776, 0.0
    %v898 = vmax.f32 %v780, 0.0
    %v899 = vmax.f32 %v782, 0.0
    %v900 = vmax.f32 %v786, 0.0
    %v901 = vmax.f32 %v788, 0.0
    %v902 = vadd.f32 %v894, %v830
    %v903 = vadd.f32 %v895, %v839
    %v904 = vadd.f32 %v896, %v848
    %v905 = vadd.f32 %v897, %v857
    %v906 = vadd.f32 %v898, %v866
    %v907 = vadd.f32 %v899, %v875
    %v908 = vadd.f32 %v900, %v884
    %v909 = vadd.f32 %v901, %v893
    %v910 = vld [vmem:[%s7] sm:$0xff]
    %v911 = vld [vmem:[%s8] sm:$0xff]
    %913 = vset.pattern.permute.xlu0 0
    %914 = vperm.xlu0 %913, %v911
    %v915 = vpop.permute.xlu0 %914
    %v918 = vsel %vm439, %v910, 0
    %920 = vmatprep.subr.mxu0 %v903
    %921 = vmatpush1.msra.mxu0 %v902
    %922 = vmatprep.subr.mxu0 %v905
    %923 = vmatpush1.msra.mxu0 %v904
    %924 = vmatprep.subr.mxu0 %v907
    %925 = vmatpush1.msra.mxu0 %v906
    %926 = vmatprep.subr.mxu0 %v909
    %927 = vmatpush1.msra.mxu0 %v908
    %928 = vmatprep.subr.mxu0 0.0
    %929 = vmatpush1.msra.mxu0 0.0
    %930 = vmatprep.subr.mxu0 0.0
    %931 = vmatpush1.msra.mxu0 0.0
    %932 = vmatprep.subr.mxu0 0.0
    %933 = vmatpush1.msra.mxu0 0.0
    %934 = vmatprep.subr.mxu0 0.0
    %935 = vmatpush1.msra.mxu0 0.0
    %936 = vmatprep.subr.mxu0 0.0
    %937 = vmatpush1.msra.mxu0 0.0
    %938 = vmatprep.subr.mxu0 0.0
    %939 = vmatpush1.msra.mxu0 0.0
    %940 = vmatprep.subr.mxu0 0.0
    %941 = vmatpush1.msra.mxu0 0.0
    %942 = vmatprep.subr.mxu0 0.0
    %943 = vmatpush1.msra.mxu0 0.0
    %944 = vmatprep.subr.mxu0 0.0
    %945 = vmatpush1.msra.mxu0 0.0
    %946 = vmatprep.subr.mxu0 0.0
    %947 = vmatpush1.msra.mxu0 0.0
    %948 = vmatprep.subr.mxu0 0.0
    %949 = vmatpush1.msra.mxu0 0.0
    %950 = vmatprep.subr.mxu0 0.0
    %951 = vmatpush1.msra.mxu0 0.0
    %952 = vmatprep.subr.mxu0 0.0
    %953 = vmatpush1.msra.mxu0 0.0
    %954 = vmatprep.subr.mxu0 0.0
    %955 = vmatpush1.msra.mxu0 0.0
    %956 = vmatprep.subr.mxu0 0.0
    %957 = vmatpush1.msra.mxu0 0.0
    %958 = vmatprep.subr.mxu0 0.0
    %959 = vmatpush1.msra.mxu0 0.0
    %960 = vmatprep.subr.mxu0 0.0
    %961 = vmatpush1.msra.mxu0 0.0
    %962 = vmatprep.subr.mxu0 0.0
    %963 = vmatpush1.msra.mxu0 0.0
    %964 = vmatprep.subr.mxu0 0.0
    %965 = vmatpush1.msra.mxu0 0.0
    %966 = vmatprep.subr.mxu0 0.0
    %967 = vmatpush1.msra.mxu0 0.0
    %968 = vmatprep.subr.mxu0 0.0
    %969 = vmatpush1.msra.mxu0 0.0
    %970 = vmatprep.subr.mxu0 0.0
    %971 = vmatpush1.msra.mxu0 0.0
    %972 = vmatprep.subr.mxu0 0.0
    %973 = vmatpush1.msra.mxu0 0.0
    %974 = vmatprep.subr.mxu0 0.0
    %975 = vmatpush1.msra.mxu0 0.0
    %976 = vmatprep.subr.mxu0 0.0
    %977 = vmatpush1.msra.mxu0 0.0
    %978 = vmatprep.subr.mxu0 0.0
    %979 = vmatpush1.msra.mxu0 0.0
    %980 = vmatprep.subr.mxu0 0.0
    %981 = vmatpush1.msra.mxu0 0.0
    %982 = vmatprep.subr.mxu0 0.0
    %983 = vmatpush1.msra.mxu0 0.0
    %984 = vmatprep.mubr.f32.mxu0 0.0
    %985 = vmatmul.mubr.f32.gmra.mrb[0].mxu0 %v918
    %v986 = vpop.f32.mrb[0].mxu0
    %v987 = vadd.f32 %v915, %v986
    %v988 = vpop.f32.mrb[0].mxu0
    %v989 = vadd.f32 %v915, %v988
    %990 = vdwg.mxu0
    %991 = vst [vmem:[#allocation2] sm:$0xff] %v987
    %992 = vst [vmem:[#allocation2 + $0x8] sm:$0xff] %v989
    // Predicated region
    $region38: #{tpu_custom_call.1} parent=1 // pred_check
      _
    $region39: #{tpu_custom_call.1} parent=1 // pred_check_branch
      %994 = sbr.rel (0) target = $region41
    $region40: #{tpu_custom_call.1} parent=1 // pred_region
      %s996 = ssub.s32 256, 256
      %997 = vsyncadd [#allocation3], %s996
      %s999 = sshll.u32 [#allocation2], 4
      %s1000 = int_to_ptr.vmem [resolvable:$true] %s999
      %1002 = dma.vmem_to_hbm [thread:$0]  %s1000, 256, %s9, [#allocation3]
    $region41: #{tpu_custom_call.1} parent=1 // pred_fallthru
      _
    // Predicated region
    $region42: #{tpu_custom_call.1} parent=1 // pred_check
      _
    $region43: #{tpu_custom_call.1} parent=1 // pred_check_branch
      %1004 = sbr.rel (0) target = $region45
    $region44: #{tpu_custom_call.1} parent=1 // pred_region
      %1005 = dma.done [#allocation3], 256
    $region45: #{tpu_custom_call.1} parent=1 // pred_fallthru
      _
    %1006 = vsyncpa [#allocation3], 1

// kernel: tpu_custom_call.1
$region0: #{tpu_custom_call.1}
  #allocation0 [shape = 'u32[]', space=smem, size = 0x4, offset = 0x4, fixed_abs, tag = 'smem constant byte address 0x4 - core index']
  #allocation1 [shape = 'u32[144,128]{1,0:T(1,128)}', space=vmem, size = 0x12000, scoped, tag = 'internal scratch']
  %s0 = inlined_call_operand.vmem [shape: f32[256,16], index: 0, kind: input, shape index: {}]
  %s1 = inlined_call_operand.vmem [shape: f32[32,16], index: 1, kind: input, shape index: {}]
  %s2 = inlined_call_operand.vmem [shape: f32[32,1], index: 2, kind: input, shape index: {}]
  %s3 = inlined_call_operand.vmem [shape: f32[32,32], index: 3, kind: input, shape index: {}]
  %s4 = inlined_call_operand.vmem [shape: f32[32,1], index: 4, kind: input, shape index: {}]
  %s5 = inlined_call_operand.vmem [shape: f32[32,32], index: 5, kind: input, shape index: {}]
  %s6 = inlined_call_operand.vmem [shape: f32[32,1], index: 6, kind: input, shape index: {}]
  %s7 = inlined_call_operand.vmem [shape: f32[8,32], index: 7, kind: input, shape index: {}]
  %s8 = inlined_call_operand.vmem [shape: f32[8,1], index: 8, kind: input, shape index: {}]
  %s9 = inlined_call_operand.hbm [shape: f32[8,256], index: 9, kind: output, shape index: {}]
  %s10 = sld [smem:[#allocation0]]
  $region46: #{tpu_custom_call.1} parent=0
    _
  %s12 = ssub.s32 1, %s10
  %s13 = scalar_select 0, %s12, %s10
  $region1: #{tpu_custom_call.1} parent=0
    #allocation2 [shape = 'u8[8192]{0}', space=vmem, size = 0x2000, scoped, tag = 'output window, operand 0, single buffered']
    #allocation3 [shape = 's32[1]{0}', space=sflag, size = 0x4, scoped, tag = 'scoped memory for tpu_custom_call.1']
    %14 = vsyncpa [#allocation3], 0
    // Predicated region
    $region2: #{tpu_custom_call.1} parent=1 // pred_check
      _
    $region3: #{tpu_custom_call.1} parent=1 // pred_check_branch
      %16 = sbr.rel (0) target = $region5
    $region4: #{tpu_custom_call.1} parent=1 // pred_region
      _
    $region5: #{tpu_custom_call.1} parent=1 // pred_fallthru
      _
    // Predicated region
    $region6: #{tpu_custom_call.1} parent=1 // pred_check
      _
    $region7: #{tpu_custom_call.1} parent=1 // pred_check_branch
      %18 = sbr.rel (0) target = $region9
    $region8: #{tpu_custom_call.1} parent=1 // pred_region
      _
    $region9: #{tpu_custom_call.1} parent=1 // pred_fallthru
      _
    // Predicated region
    $region10: #{tpu_custom_call.1} parent=1 // pred_check
      _
    $region11: #{tpu_custom_call.1} parent=1 // pred_check_branch
      %20 = sbr.rel (0) target = $region13
    $region12: #{tpu_custom_call.1} parent=1 // pred_region
      _
    $region13: #{tpu_custom_call.1} parent=1 // pred_fallthru
      _
    // Predicated region
    $region14: #{tpu_custom_call.1} parent=1 // pred_check
      _
    $region15: #{tpu_custom_call.1} parent=1 // pred_check_branch
      %22 = sbr.rel (0) target = $region17
    $region16: #{tpu_custom_call.1} parent=1 // pred_region
      _
    $region17: #{tpu_custom_call.1} parent=1 // pred_fallthru
      _
    // Predicated region
    $region18: #{tpu_custom_call.1} parent=1 // pred_check
      _
    $region19: #{tpu_custom_call.1} parent=1 // pred_check_branch
      %24 = sbr.rel (0) target = $region21
    $region20: #{tpu_custom_call.1} parent=1 // pred_region
      _
    $region21: #{tpu_custom_call.1} parent=1 // pred_fallthru
      _
    // Predicated region
    $region22: #{tpu_custom_call.1} parent=1 // pred_check
      _
    $region23: #{tpu_custom_call.1} parent=1 // pred_check_branch
      %26 = sbr.rel (0) target = $region25
    $region24: #{tpu_custom_call.1} parent=1 // pred_region
      _
    $region25: #{tpu_custom_call.1} parent=1 // pred_fallthru
      _
    // Predicated region
    $region26: #{tpu_custom_call.1} parent=1 // pred_check
      _
    $region27: #{tpu_custom_call.1} parent=1 // pred_check_branch
      %28 = sbr.rel (0) target = $region29
    $region28: #{tpu_custom_call.1} parent=1 // pred_region
      _
    $region29: #{tpu_custom_call.1} parent=1 // pred_fallthru
      _
    // Predicated region
    $region30: #{tpu_custom_call.1} parent=1 // pred_check
      _
    $region31: #{tpu_custom_call.1} parent=1 // pred_check_branch
      %30 = sbr.rel (0) target = $region33
    $region32: #{tpu_custom_call.1} parent=1 // pred_region
      _
    $region33: #{tpu_custom_call.1} parent=1 // pred_fallthru
      _
    // Predicated region
    $region34: #{tpu_custom_call.1} parent=1 // pred_check
      _
    $region35: #{tpu_custom_call.1} parent=1 // pred_check_branch
      %32 = sbr.rel (0) target = $region37
    $region36: #{tpu_custom_call.1} parent=1 // pred_region
      _
    $region37: #{tpu_custom_call.1} parent=1 // pred_fallthru
      _
    %v33 = vld [vmem:[%s0] sm:$0xff]
    %v34 = vld [vmem:[%s0 + $0x8] sm:$0xff]
    %v35 = vld [vmem:[%s0 + $0x10] sm:$0xff]
    %v36 = vld [vmem:[%s0 + $0x18] sm:$0xff]
    %v37 = vld [vmem:[%s0 + $0x20] sm:$0xff]
    %v38 = vld [vmem:[%s0 + $0x28] sm:$0xff]
    %v39 = vld [vmem:[%s0 + $0x30] sm:$0xff]
    %v40 = vld [vmem:[%s0 + $0x38] sm:$0xff]
    %v41 = vld [vmem:[%s0 + $0x40] sm:$0xff]
    %v42 = vld [vmem:[%s0 + $0x48] sm:$0xff]
    %v43 = vld [vmem:[%s0 + $0x50] sm:$0xff]
    %v44 = vld [vmem:[%s0 + $0x58] sm:$0xff]
    %v45 = vld [vmem:[%s0 + $0x60] sm:$0xff]
    %v46 = vld [vmem:[%s0 + $0x68] sm:$0xff]
    %v47 = vld [vmem:[%s0 + $0x70] sm:$0xff]
    %v48 = vld [vmem:[%s0 + $0x78] sm:$0xff]
    %v49 = vld [vmem:[%s0 + $0x80] sm:$0xff]
    %v50 = vld [vmem:[%s0 + $0x88] sm:$0xff]
    %v51 = vld [vmem:[%s0 + $0x90] sm:$0xff]
    %v52 = vld [vmem:[%s0 + $0x98] sm:$0xff]
    %v53 = vld [vmem:[%s0 + $0xa0] sm:$0xff]
    %v54 = vld [vmem:[%s0 + $0xa8] sm:$0xff]
    %v55 = vld [vmem:[%s0 + $0xb0] sm:$0xff]
    %v56 = vld [vmem:[%s0 + $0xb8] sm:$0xff]
    %v57 = vld [vmem:[%s0 + $0xc0] sm:$0xff]
    %v58 = vld [vmem:[%s0 + $0xc8] sm:$0xff]
    %v59 = vld [vmem:[%s0 + $0xd0] sm:$0xff]
    %v60 = vld [vmem:[%s0 + $0xd8] sm:$0xff]
    %v61 = vld [vmem:[%s0 + $0xe0] sm:$0xff]
    %v62 = vld [vmem:[%s0 + $0xe8] sm:$0xff]
    %v63 = vld [vmem:[%s0 + $0xf0] sm:$0xff]
    %v64 = vld [vmem:[%s0 + $0xf8] sm:$0xff]
    %v65 = vld [vmem:[%s1] sm:$0xff]
    %v66 = vld [vmem:[%s1 + $0x8] sm:$0xff]
    %v67 = vld [vmem:[%s1 + $0x10] sm:$0xff]
    %v68 = vld [vmem:[%s1 + $0x18] sm:$0xff]
    %v69 = vld [vmem:[%s2] sm:$0xff]
    %v70 = vld [vmem:[%s2 + $0x8] sm:$0xff]
    %v71 = vld [vmem:[%s2 + $0x10] sm:$0xff]
    %v72 = vld [vmem:[%s2 + $0x18] sm:$0xff]
    %74 = vset.pattern.permute.xlu0 0
    %75 = vperm.xlu0 %74, %v69
    %v76 = vpop.permute.xlu0 %75
    %79 = vset.pattern.permute.xlu0 0
    %80 = vperm.xlu0 %79, %v70
    %v81 = vpop.permute.xlu0 %80
    %84 = vset.pattern.permute.xlu0 0
    %85 = vperm.xlu0 %84, %v71
    %v86 = vpop.permute.xlu0 %85
    %89 = vset.pattern.permute.xlu0 0
    %90 = vperm.xlu0 %89, %v72
    %v91 = vpop.permute.xlu0 %90
    %vm93 = vcmask 130048
    %v95 = vsel %vm93, %v65, 0
    %v98 = vsel %vm93, %v66, 0
    %v101 = vsel %vm93, %v67, 0
    %v104 = vsel %vm93, %v68, 0
    %v107 = vsel %vm93, %v33, 0
    %v110 = vsel %vm93, %v34, 0
    %v113 = vsel %vm93, %v35, 0
    %v116 = vsel %vm93, %v36, 0
    %v119 = vsel %vm93, %v37, 0
    %v122 = vsel %vm93, %v38, 0
    %v125 = vsel %vm93, %v39, 0
    %v128 = vsel %vm93, %v40, 0
    %v131 = vsel %vm93, %v41, 0
    %v134 = vsel %vm93, %v42, 0
    %v137 = vsel %vm93, %v43, 0
    %v140 = vsel %vm93, %v44, 0
    %v143 = vsel %vm93, %v45, 0
    %v146 = vsel %vm93, %v46, 0
    %v149 = vsel %vm93, %v47, 0
    %v152 = vsel %vm93, %v48, 0
    %v155 = vsel %vm93, %v49, 0
    %v158 = vsel %vm93, %v50, 0
    %v161 = vsel %vm93, %v51, 0
    %v164 = vsel %vm93, %v52, 0
    %v167 = vsel %vm93, %v53, 0
    %v170 = vsel %vm93, %v54, 0
    %v173 = vsel %vm93, %v55, 0
    %v176 = vsel %vm93, %v56, 0
    %v179 = vsel %vm93, %v57, 0
    %v182 = vsel %vm93, %v58, 0
    %v185 = vsel %vm93, %v59, 0
    %v188 = vsel %vm93, %v60, 0
    %v191 = vsel %vm93, %v61, 0
    %v194 = vsel %vm93, %v62, 0
    %v197 = vsel %vm93, %v63, 0
    %v200 = vsel %vm93, %v64, 0
    %202 = vmatprep.subr.mxu0 0.0
    %203 = vmatpush1.xpose.msra.mxu0 %v107
    %204 = vmatprep.subr.mxu0 0.0
    %205 = vmatpush1.xpose.msra.mxu0 %v110
    %206 = vmatprep.subr.mxu0 0.0
    %207 = vmatpush1.xpose.msra.mxu0 %v113
    %208 = vmatprep.subr.mxu0 0.0
    %209 = vmatpush1.xpose.msra.mxu0 %v116
    %210 = vmatprep.subr.mxu0 0.0
    %211 = vmatpush1.xpose.msra.mxu0 %v119
    %212 = vmatprep.subr.mxu0 0.0
    %213 = vmatpush1.xpose.msra.mxu0 %v122
    %214 = vmatprep.subr.mxu0 0.0
    %215 = vmatpush1.xpose.msra.mxu0 %v125
    %216 = vmatprep.subr.mxu0 0.0
    %217 = vmatpush1.xpose.msra.mxu0 %v128
    %218 = vmatprep.subr.mxu0 0.0
    %219 = vmatpush1.xpose.msra.mxu0 %v131
    %220 = vmatprep.subr.mxu0 0.0
    %221 = vmatpush1.xpose.msra.mxu0 %v134
    %222 = vmatprep.subr.mxu0 0.0
    %223 = vmatpush1.xpose.msra.mxu0 %v137
    %224 = vmatprep.subr.mxu0 0.0
    %225 = vmatpush1.xpose.msra.mxu0 %v140
    %226 = vmatprep.subr.mxu0 0.0
    %227 = vmatpush1.xpose.msra.mxu0 %v143
    %228 = vmatprep.subr.mxu0 0.0
    %229 = vmatpush1.xpose.msra.mxu0 %v146
    %230 = vmatprep.subr.mxu0 0.0
    %231 = vmatpush1.xpose.msra.mxu0 %v149
    %232 = vmatprep.subr.mxu0 0.0
    %233 = vmatpush1.xpose.msra.mxu0 %v152
    %234 = vmatprep.subr.mxu0 0.0
    %235 = vmatpush1.xpose.msra.mxu0 %v155
    %236 = vmatprep.subr.mxu0 0.0
    %237 = vmatpush1.xpose.msra.mxu0 %v158
    %238 = vmatprep.subr.mxu0 0.0
    %239 = vmatpush1.xpose.msra.mxu0 %v161
    %240 = vmatprep.subr.mxu0 0.0
    %241 = vmatpush1.xpose.msra.mxu0 %v164
    %242 = vmatprep.subr.mxu0 0.0
    %243 = vmatpush1.xpose.msra.mxu0 %v167
    %244 = vmatprep.subr.mxu0 0.0
    %245 = vmatpush1.xpose.msra.mxu0 %v170
    %246 = vmatprep.subr.mxu0 0.0
    %247 = vmatpush1.xpose.msra.mxu0 %v173
    %248 = vmatprep.subr.mxu0 0.0
    %249 = vmatpush1.xpose.msra.mxu0 %v176
    %250 = vmatprep.subr.mxu0 0.0
    %251 = vmatpush1.xpose.msra.mxu0 %v179
    %252 = vmatprep.subr.mxu0 0.0
    %253 = vmatpush1.xpose.msra.mxu0 %v182
    %254 = vmatprep.subr.mxu0 0.0
    %255 = vmatpush1.xpose.msra.mxu0 %v185
    %256 = vmatprep.subr.mxu0 0.0
    %257 = vmatpush1.xpose.msra.mxu0 %v188
    %258 = vmatprep.subr.mxu0 0.0
    %259 = vmatpush1.xpose.msra.mxu0 %v191
    %260 = vmatprep.subr.mxu0 0.0
    %261 = vmatpush1.xpose.msra.mxu0 %v194
    %262 = vmatprep.subr.mxu0 0.0
    %263 = vmatpush1.xpose.msra.mxu0 %v197
    %264 = vmatprep.subr.mxu0 0.0
    %265 = vmatpush1.xpose.msra.mxu0 %v200
    %266 = vmatprep.mubr.f32.mxu0 0.0
    %267 = vmatmul.mubr.f32.gmra.mrb[0].mxu0 %v95
    %v268 = vpop.f32.mrb[0].mxu0
    %v269 = vadd.f32 %v76, %v268
    %v270 = vpop.f32.mrb[0].mxu0
    %v271 = vadd.f32 %v76, %v270
    %272 = vmatprep.mubr.f32.mxu0 0.0
    %273 = vmatmul.mubr.f32.gmra.mrb[0].mxu0 %v98
    %v274 = vpop.f32.mrb[0].mxu0
    %v275 = vadd.f32 %v81, %v274
    %v276 = vpop.f32.mrb[0].mxu0
    %v277 = vadd.f32 %v81, %v276
    %278 = vmatprep.mubr.f32.mxu0 0.0
    %279 = vmatmul.mubr.f32.gmra.mrb[0].mxu0 %v101
    %v280 = vpop.f32.mrb[0].mxu0
    %v281 = vadd.f32 %v86, %v280
    %v282 = vpop.f32.mrb[0].mxu0
    %v283 = vadd.f32 %v86, %v282
    %284 = vmatprep.mubr.f32.mxu0 0.0
    %285 = vmatmul.mubr.f32.gmra.mrb[0].mxu0 %v104
    %v286 = vpop.f32.mrb[0].mxu0
    %v287 = vadd.f32 %v91, %v286
    %v288 = vpop.f32.mrb[0].mxu0
    %v289 = vadd.f32 %v91, %v288
    %290 = vdwg.mxu0
    %v291 = vand.u32 2147483647, %v269
    %v292 = vand.u32 2147483647, %v271
    %v293 = vand.u32 2147483647, %v275
    %v294 = vand.u32 2147483647, %v277
    %v295 = vand.u32 2147483647, %v281
    %v296 = vand.u32 2147483647, %v283
    %v297 = vand.u32 2147483647, %v287
    %v298 = vand.u32 2147483647, %v289
    %v299 = vsub.f32 0.0, %v291
    %v300 = vsub.f32 0.0, %v292
    %v301 = vsub.f32 0.0, %v293
    %v302 = vsub.f32 0.0, %v294
    %v303 = vsub.f32 0.0, %v295
    %v304 = vsub.f32 0.0, %v296
    %v305 = vsub.f32 0.0, %v297
    %v306 = vsub.f32 0.0, %v298
    %v307 = vmul.f32 %v299, 1.442695
    %v308 = vpow.pop %v307
    %v309 = vmul.f32 %v300, 1.442695
    %v310 = vpow.pop %v309
    %v311 = vmul.f32 %v301, 1.442695
    %v312 = vpow.pop %v311
    %v313 = vmul.f32 %v302, 1.442695
    %v314 = vpow.pop %v313
    %v315 = vmul.f32 %v303, 1.442695
    %v316 = vpow.pop %v315
    %v317 = vmul.f32 %v304, 1.442695
    %v318 = vpow.pop %v317
    %v319 = vmul.f32 %v305, 1.442695
    %v320 = vpow.pop %v319
    %v321 = vmul.f32 %v306, 1.442695
    %v322 = vpow.pop %v321
    %v323 = vadd.f32 %v308, 1.0
    %v324 = vlog2.pop %v323
    %v325 = vmul.f32 %v324, 0.6931472
    %v326 = vmul.f32 -0.5, %v308
    %v327 = vadd.f32 %v326, 1.0
    %v328 = vmul.f32 %v327, %v308
    %v329 = vand.u32 2147483647, %v308
    %vm330 = vcmp.lt.f32.partialorder %v329, 0.0004427343
    %v331 = vsel %vm330, %v328, %v325
    %v332 = vadd.f32 %v310, 1.0
    %v333 = vlog2.pop %v332
    %v334 = vmul.f32 %v333, 0.6931472
    %v335 = vmul.f32 -0.5, %v310
    %v336 = vadd.f32 %v335, 1.0
    %v337 = vmul.f32 %v336, %v310
    %v338 = vand.u32 2147483647, %v310
    %vm339 = vcmp.lt.f32.partialorder %v338, 0.0004427343
    %v340 = vsel %vm339, %v337, %v334
    %v341 = vadd.f32 %v312, 1.0
    %v342 = vlog2.pop %v341
    %v343 = vmul.f32 %v342, 0.6931472
    %v344 = vmul.f32 -0.5, %v312
    %v345 = vadd.f32 %v344, 1.0
    %v346 = vmul.f32 %v345, %v312
    %v347 = vand.u32 2147483647, %v312
    %vm348 = vcmp.lt.f32.partialorder %v347, 0.0004427343
    %v349 = vsel %vm348, %v346, %v343
    %v350 = vadd.f32 %v314, 1.0
    %v351 = vlog2.pop %v350
    %v352 = vmul.f32 %v351, 0.6931472
    %v353 = vmul.f32 -0.5, %v314
    %v354 = vadd.f32 %v353, 1.0
    %v355 = vmul.f32 %v354, %v314
    %v356 = vand.u32 2147483647, %v314
    %vm357 = vcmp.lt.f32.partialorder %v356, 0.0004427343
    %v358 = vsel %vm357, %v355, %v352
    %v359 = vadd.f32 %v316, 1.0
    %v360 = vlog2.pop %v359
    %v361 = vmul.f32 %v360, 0.6931472
    %v362 = vmul.f32 -0.5, %v316
    %v363 = vadd.f32 %v362, 1.0
    %v364 = vmul.f32 %v363, %v316
    %v365 = vand.u32 2147483647, %v316
    %vm366 = vcmp.lt.f32.partialorder %v365, 0.0004427343
    %v367 = vsel %vm366, %v364, %v361
    %v368 = vadd.f32 %v318, 1.0
    %v369 = vlog2.pop %v368
    %v370 = vmul.f32 %v369, 0.6931472
    %v371 = vmul.f32 -0.5, %v318
    %v372 = vadd.f32 %v371, 1.0
    %v373 = vmul.f32 %v372, %v318
    %v374 = vand.u32 2147483647, %v318
    %vm375 = vcmp.lt.f32.partialorder %v374, 0.0004427343
    %v376 = vsel %vm375, %v373, %v370
    %v377 = vadd.f32 %v320, 1.0
    %v378 = vlog2.pop %v377
    %v379 = vmul.f32 %v378, 0.6931472
    %v380 = vmul.f32 -0.5, %v320
    %v381 = vadd.f32 %v380, 1.0
    %v382 = vmul.f32 %v381, %v320
    %v383 = vand.u32 2147483647, %v320
    %vm384 = vcmp.lt.f32.partialorder %v383, 0.0004427343
    %v385 = vsel %vm384, %v382, %v379
    %v386 = vadd.f32 %v322, 1.0
    %v387 = vlog2.pop %v386
    %v388 = vmul.f32 %v387, 0.6931472
    %v389 = vmul.f32 -0.5, %v322
    %v390 = vadd.f32 %v389, 1.0
    %v391 = vmul.f32 %v390, %v322
    %v392 = vand.u32 2147483647, %v322
    %vm393 = vcmp.lt.f32.partialorder %v392, 0.0004427343
    %v394 = vsel %vm393, %v391, %v388
    %v395 = vmax.f32 %v269, 0.0
    %v396 = vmax.f32 %v271, 0.0
    %v397 = vmax.f32 %v275, 0.0
    %v398 = vmax.f32 %v277, 0.0
    %v399 = vmax.f32 %v281, 0.0
    %v400 = vmax.f32 %v283, 0.0
    %v401 = vmax.f32 %v287, 0.0
    %v402 = vmax.f32 %v289, 0.0
    %v403 = vadd.f32 %v395, %v331
    %v404 = vadd.f32 %v396, %v340
    %v405 = vadd.f32 %v397, %v349
    %v406 = vadd.f32 %v398, %v358
    %v407 = vadd.f32 %v399, %v367
    %v408 = vadd.f32 %v400, %v376
    %v409 = vadd.f32 %v401, %v385
    %v410 = vadd.f32 %v402, %v394
    %v411 = vld [vmem:[%s3] sm:$0xff]
    %v412 = vld [vmem:[%s3 + $0x8] sm:$0xff]
    %v413 = vld [vmem:[%s3 + $0x10] sm:$0xff]
    %v414 = vld [vmem:[%s3 + $0x18] sm:$0xff]
    %v415 = vld [vmem:[%s4] sm:$0xff]
    %v416 = vld [vmem:[%s4 + $0x8] sm:$0xff]
    %v417 = vld [vmem:[%s4 + $0x10] sm:$0xff]
    %v418 = vld [vmem:[%s4 + $0x18] sm:$0xff]
    %420 = vset.pattern.permute.xlu0 0
    %421 = vperm.xlu0 %420, %v415
    %v422 = vpop.permute.xlu0 %421
    %425 = vset.pattern.permute.xlu0 0
    %426 = vperm.xlu0 %425, %v416
    %v427 = vpop.permute.xlu0 %426
    %430 = vset.pattern.permute.xlu0 0
    %431 = vperm.xlu0 %430, %v417
    %v432 = vpop.permute.xlu0 %431
    %435 = vset.pattern.permute.xlu0 0
    %436 = vperm.xlu0 %435, %v418
    %v437 = vpop.permute.xlu0 %436
    %vm439 = vcmask 261120
    %v441 = vsel %vm439, %v411, 0
    %v444 = vsel %vm439, %v412, 0
    %v447 = vsel %vm439, %v413, 0
    %v450 = vsel %vm439, %v414, 0
    %452 = vmatprep.subr.mxu0 %v404
    %453 = vmatpush1.msra.mxu0 %v403
    %454 = vmatprep.subr.mxu0 %v406
    %455 = vmatpush1.msra.mxu0 %v405
    %456 = vmatprep.subr.mxu0 %v408
    %457 = vmatpush1.msra.mxu0 %v407
    %458 = vmatprep.subr.mxu0 %v410
    %459 = vmatpush1.msra.mxu0 %v409
    %460 = vmatprep.subr.mxu0 0.0
    %461 = vmatpush1.msra.mxu0 0.0
    %462 = vmatprep.subr.mxu0 0.0
    %463 = vmatpush1.msra.mxu0 0.0
    %464 = vmatprep.subr.mxu0 0.0
    %465 = vmatpush1.msra.mxu0 0.0
    %466 = vmatprep.subr.mxu0 0.0
    %467 = vmatpush1.msra.mxu0 0.0
    %468 = vmatprep.subr.mxu0 0.0
    %469 = vmatpush1.msra.mxu0 0.0
    %470 = vmatprep.subr.mxu0 0.0
    %471 = vmatpush1.msra.mxu0 0.0
    %472 = vmatprep.subr.mxu0 0.0
    %473 = vmatpush1.msra.mxu0 0.0
    %474 = vmatprep.subr.mxu0 0.0
    %475 = vmatpush1.msra.mxu0 0.0
    %476 = vmatprep.subr.mxu0 0.0
    %477 = vmatpush1.msra.mxu0 0.0
    %478 = vmatprep.subr.mxu0 0.0
    %479 = vmatpush1.msra.mxu0 0.0
    %480 = vmatprep.subr.mxu0 0.0
    %481 = vmatpush1.msra.mxu0 0.0
    %482 = vmatprep.subr.mxu0 0.0
    %483 = vmatpush1.msra.mxu0 0.0
    %484 = vmatprep.subr.mxu0 0.0
    %485 = vmatpush1.msra.mxu0 0.0
    %486 = vmatprep.subr.mxu0 0.0
    %487 = vmatpush1.msra.mxu0 0.0
    %488 = vmatprep.subr.mxu0 0.0
    %489 = vmatpush1.msra.mxu0 0.0
    %490 = vmatprep.subr.mxu0 0.0
    %491 = vmatpush1.msra.mxu0 0.0
    %492 = vmatprep.subr.mxu0 0.0
    %493 = vmatpush1.msra.mxu0 0.0
    %494 = vmatprep.subr.mxu0 0.0
    %495 = vmatpush1.msra.mxu0 0.0
    %496 = vmatprep.subr.mxu0 0.0
    %497 = vmatpush1.msra.mxu0 0.0
    %498 = vmatprep.subr.mxu0 0.0
    %499 = vmatpush1.msra.mxu0 0.0
    %500 = vmatprep.subr.mxu0 0.0
    %501 = vmatpush1.msra.mxu0 0.0
    %502 = vmatprep.subr.mxu0 0.0
    %503 = vmatpush1.msra.mxu0 0.0
    %504 = vmatprep.subr.mxu0 0.0
    %505 = vmatpush1.msra.mxu0 0.0
    %506 = vmatprep.subr.mxu0 0.0
    %507 = vmatpush1.msra.mxu0 0.0
    %508 = vmatprep.subr.mxu0 0.0
    %509 = vmatpush1.msra.mxu0 0.0
    %510 = vmatprep.subr.mxu0 0.0
    %511 = vmatpush1.msra.mxu0 0.0
    %512 = vmatprep.subr.mxu0 0.0
    %513 = vmatpush1.msra.mxu0 0.0
    %514 = vmatprep.subr.mxu0 0.0
    %515 = vmatpush1.msra.mxu0 0.0
    %516 = vmatprep.mubr.f32.mxu0 0.0
    %517 = vmatmul.mubr.f32.gmra.mrb[0].mxu0 %v441
    %v518 = vpop.f32.mrb[0].mxu0
    %v519 = vadd.f32 %v422, %v518
    %v520 = vpop.f32.mrb[0].mxu0
    %v521 = vadd.f32 %v422, %v520
    %522 = vmatprep.mubr.f32.mxu0 0.0
    %523 = vmatmul.mubr.f32.gmra.mrb[0].mxu0 %v444
    %v524 = vpop.f32.mrb[0].mxu0
    %v525 = vadd.f32 %v427, %v524
    %v526 = vpop.f32.mrb[0].mxu0
    %v527 = vadd.f32 %v427, %v526
    %528 = vmatprep.mubr.f32.mxu0 0.0
    %529 = vmatmul.mubr.f32.gmra.mrb[0].mxu0 %v447
    %v530 = vpop.f32.mrb[0].mxu0
    %v531 = vadd.f32 %v432, %v530
    %v532 = vpop.f32.mrb[0].mxu0
    %v533 = vadd.f32 %v432, %v532
    %534 = vmatprep.mubr.f32.mxu0 0.0
    %535 = vmatmul.mubr.f32.gmra.mrb[0].mxu0 %v450
    %v536 = vpop.f32.mrb[0].mxu0
    %v537 = vadd.f32 %v437, %v536
    %v538 = vpop.f32.mrb[0].mxu0
    %v539 = vadd.f32 %v437, %v538
    %540 = vdwg.mxu0
    %v541 = vand.u32 2147483647, %v519
    %v542 = vand.u32 2147483647, %v521
    %v543 = vand.u32 2147483647, %v525
    %v544 = vand.u32 2147483647, %v527
    %v545 = vand.u32 2147483647, %v531
    %v546 = vand.u32 2147483647, %v533
    %v547 = vand.u32 2147483647, %v537
    %v548 = vand.u32 2147483647, %v539
    %v549 = vsub.f32 0.0, %v541
    %v550 = vsub.f32 0.0, %v542
    %v551 = vsub.f32 0.0, %v543
    %v552 = vsub.f32 0.0, %v544
    %v553 = vsub.f32 0.0, %v545
    %v554 = vsub.f32 0.0, %v546
    %v555 = vsub.f32 0.0, %v547
    %v556 = vsub.f32 0.0, %v548
    %v557 = vmul.f32 %v549, 1.442695
    %v558 = vpow.pop %v557
    %v559 = vmul.f32 %v550, 1.442695
    %v560 = vpow.pop %v559
    %v561 = vmul.f32 %v551, 1.442695
    %v562 = vpow.pop %v561
    %v563 = vmul.f32 %v552, 1.442695
    %v564 = vpow.pop %v563
    %v565 = vmul.f32 %v553, 1.442695
    %v566 = vpow.pop %v565
    %v567 = vmul.f32 %v554, 1.442695
    %v568 = vpow.pop %v567
    %v569 = vmul.f32 %v555, 1.442695
    %v570 = vpow.pop %v569
    %v571 = vmul.f32 %v556, 1.442695
    %v572 = vpow.pop %v571
    %v573 = vadd.f32 %v558, 1.0
    %v574 = vlog2.pop %v573
    %v575 = vmul.f32 %v574, 0.6931472
    %v576 = vmul.f32 -0.5, %v558
    %v577 = vadd.f32 %v576, 1.0
    %v578 = vmul.f32 %v577, %v558
    %v579 = vand.u32 2147483647, %v558
    %vm580 = vcmp.lt.f32.partialorder %v579, 0.0004427343
    %v581 = vsel %vm580, %v578, %v575
    %v582 = vadd.f32 %v560, 1.0
    %v583 = vlog2.pop %v582
    %v584 = vmul.f32 %v583, 0.6931472
    %v585 = vmul.f32 -0.5, %v560
    %v586 = vadd.f32 %v585, 1.0
    %v587 = vmul.f32 %v586, %v560
    %v588 = vand.u32 2147483647, %v560
    %vm589 = vcmp.lt.f32.partialorder %v588, 0.0004427343
    %v590 = vsel %vm589, %v587, %v584
    %v591 = vadd.f32 %v562, 1.0
    %v592 = vlog2.pop %v591
    %v593 = vmul.f32 %v592, 0.6931472
    %v594 = vmul.f32 -0.5, %v562
    %v595 = vadd.f32 %v594, 1.0
    %v596 = vmul.f32 %v595, %v562
    %v597 = vand.u32 2147483647, %v562
    %vm598 = vcmp.lt.f32.partialorder %v597, 0.0004427343
    %v599 = vsel %vm598, %v596, %v593
    %v600 = vadd.f32 %v564, 1.0
    %v601 = vlog2.pop %v600
    %v602 = vmul.f32 %v601, 0.6931472
    %v603 = vmul.f32 -0.5, %v564
    %v604 = vadd.f32 %v603, 1.0
    %v605 = vmul.f32 %v604, %v564
    %v606 = vand.u32 2147483647, %v564
    %vm607 = vcmp.lt.f32.partialorder %v606, 0.0004427343
    %v608 = vsel %vm607, %v605, %v602
    %v609 = vadd.f32 %v566, 1.0
    %v610 = vlog2.pop %v609
    %v611 = vmul.f32 %v610, 0.6931472
    %v612 = vmul.f32 -0.5, %v566
    %v613 = vadd.f32 %v612, 1.0
    %v614 = vmul.f32 %v613, %v566
    %v615 = vand.u32 2147483647, %v566
    %vm616 = vcmp.lt.f32.partialorder %v615, 0.0004427343
    %v617 = vsel %vm616, %v614, %v611
    %v618 = vadd.f32 %v568, 1.0
    %v619 = vlog2.pop %v618
    %v620 = vmul.f32 %v619, 0.6931472
    %v621 = vmul.f32 -0.5, %v568
    %v622 = vadd.f32 %v621, 1.0
    %v623 = vmul.f32 %v622, %v568
    %v624 = vand.u32 2147483647, %v568
    %vm625 = vcmp.lt.f32.partialorder %v624, 0.0004427343
    %v626 = vsel %vm625, %v623, %v620
    %v627 = vadd.f32 %v570, 1.0
    %v628 = vlog2.pop %v627
    %v629 = vmul.f32 %v628, 0.6931472
    %v630 = vmul.f32 -0.5, %v570
    %v631 = vadd.f32 %v630, 1.0
    %v632 = vmul.f32 %v631, %v570
    %v633 = vand.u32 2147483647, %v570
    %vm634 = vcmp.lt.f32.partialorder %v633, 0.0004427343
    %v635 = vsel %vm634, %v632, %v629
    %v636 = vadd.f32 %v572, 1.0
    %v637 = vlog2.pop %v636
    %v638 = vmul.f32 %v637, 0.6931472
    %v639 = vmul.f32 -0.5, %v572
    %v640 = vadd.f32 %v639, 1.0
    %v641 = vmul.f32 %v640, %v572
    %v642 = vand.u32 2147483647, %v572
    %vm643 = vcmp.lt.f32.partialorder %v642, 0.0004427343
    %v644 = vsel %vm643, %v641, %v638
    %v645 = vmax.f32 %v519, 0.0
    %v646 = vmax.f32 %v521, 0.0
    %v647 = vmax.f32 %v525, 0.0
    %v648 = vmax.f32 %v527, 0.0
    %v649 = vmax.f32 %v531, 0.0
    %v650 = vmax.f32 %v533, 0.0
    %v651 = vmax.f32 %v537, 0.0
    %v652 = vmax.f32 %v539, 0.0
    %v653 = vadd.f32 %v645, %v581
    %v654 = vadd.f32 %v646, %v590
    %v655 = vadd.f32 %v647, %v599
    %v656 = vadd.f32 %v648, %v608
    %v657 = vadd.f32 %v649, %v617
    %v658 = vadd.f32 %v650, %v626
    %v659 = vadd.f32 %v651, %v635
    %v660 = vadd.f32 %v652, %v644
    %v661 = vld [vmem:[%s5] sm:$0xff]
    %v662 = vld [vmem:[%s5 + $0x8] sm:$0xff]
    %v663 = vld [vmem:[%s5 + $0x10] sm:$0xff]
    %v664 = vld [vmem:[%s5 + $0x18] sm:$0xff]
    %v665 = vld [vmem:[%s6] sm:$0xff]
    %v666 = vld [vmem:[%s6 + $0x8] sm:$0xff]
    %v667 = vld [vmem:[%s6 + $0x10] sm:$0xff]
    %v668 = vld [vmem:[%s6 + $0x18] sm:$0xff]
    %670 = vset.pattern.permute.xlu0 0
    %671 = vperm.xlu0 %670, %v665
    %v672 = vpop.permute.xlu0 %671
    %675 = vset.pattern.permute.xlu0 0
    %676 = vperm.xlu0 %675, %v666
    %v677 = vpop.permute.xlu0 %676
    %680 = vset.pattern.permute.xlu0 0
    %681 = vperm.xlu0 %680, %v667
    %v682 = vpop.permute.xlu0 %681
    %685 = vset.pattern.permute.xlu0 0
    %686 = vperm.xlu0 %685, %v668
    %v687 = vpop.permute.xlu0 %686
    %v690 = vsel %vm439, %v661, 0
    %v693 = vsel %vm439, %v662, 0
    %v696 = vsel %vm439, %v663, 0
    %v699 = vsel %vm439, %v664, 0
    %701 = vmatprep.subr.mxu0 %v654
    %702 = vmatpush1.msra.mxu0 %v653
    %703 = vmatprep.subr.mxu0 %v656
    %704 = vmatpush1.msra.mxu0 %v655
    %705 = vmatprep.subr.mxu0 %v658
    %706 = vmatpush1.msra.mxu0 %v657
    %707 = vmatprep.subr.mxu0 %v660
    %708 = vmatpush1.msra.mxu0 %v659
    %709 = vmatprep.subr.mxu0 0.0
    %710 = vmatpush1.msra.mxu0 0.0
    %711 = vmatprep.subr.mxu0 0.0
    %712 = vmatpush1.msra.mxu0 0.0
    %713 = vmatprep.subr.mxu0 0.0
    %714 = vmatpush1.msra.mxu0 0.0
    %715 = vmatprep.subr.mxu0 0.0
    %716 = vmatpush1.msra.mxu0 0.0
    %717 = vmatprep.subr.mxu0 0.0
    %718 = vmatpush1.msra.mxu0 0.0
    %719 = vmatprep.subr.mxu0 0.0
    %720 = vmatpush1.msra.mxu0 0.0
    %721 = vmatprep.subr.mxu0 0.0
    %722 = vmatpush1.msra.mxu0 0.0
    %723 = vmatprep.subr.mxu0 0.0
    %724 = vmatpush1.msra.mxu0 0.0
    %725 = vmatprep.subr.mxu0 0.0
    %726 = vmatpush1.msra.mxu0 0.0
    %727 = vmatprep.subr.mxu0 0.0
    %728 = vmatpush1.msra.mxu0 0.0
    %729 = vmatprep.subr.mxu0 0.0
    %730 = vmatpush1.msra.mxu0 0.0
    %731 = vmatprep.subr.mxu0 0.0
    %732 = vmatpush1.msra.mxu0 0.0
    %733 = vmatprep.subr.mxu0 0.0
    %734 = vmatpush1.msra.mxu0 0.0
    %735 = vmatprep.subr.mxu0 0.0
    %736 = vmatpush1.msra.mxu0 0.0
    %737 = vmatprep.subr.mxu0 0.0
    %738 = vmatpush1.msra.mxu0 0.0
    %739 = vmatprep.subr.mxu0 0.0
    %740 = vmatpush1.msra.mxu0 0.0
    %741 = vmatprep.subr.mxu0 0.0
    %742 = vmatpush1.msra.mxu0 0.0
    %743 = vmatprep.subr.mxu0 0.0
    %744 = vmatpush1.msra.mxu0 0.0
    %745 = vmatprep.subr.mxu0 0.0
    %746 = vmatpush1.msra.mxu0 0.0
    %747 = vmatprep.subr.mxu0 0.0
    %748 = vmatpush1.msra.mxu0 0.0
    %749 = vmatprep.subr.mxu0 0.0
    %750 = vmatpush1.msra.mxu0 0.0
    %751 = vmatprep.subr.mxu0 0.0
    %752 = vmatpush1.msra.mxu0 0.0
    %753 = vmatprep.subr.mxu0 0.0
    %754 = vmatpush1.msra.mxu0 0.0
    %755 = vmatprep.subr.mxu0 0.0
    %756 = vmatpush1.msra.mxu0 0.0
    %757 = vmatprep.subr.mxu0 0.0
    %758 = vmatpush1.msra.mxu0 0.0
    %759 = vmatprep.subr.mxu0 0.0
    %760 = vmatpush1.msra.mxu0 0.0
    %761 = vmatprep.subr.mxu0 0.0
    %762 = vmatpush1.msra.mxu0 0.0
    %763 = vmatprep.subr.mxu0 0.0
    %764 = vmatpush1.msra.mxu0 0.0
    %765 = vmatprep.mubr.f32.mxu0 0.0
    %766 = vmatmul.mubr.f32.gmra.mrb[0].mxu0 %v690
    %v767 = vpop.f32.mrb[0].mxu0
    %v768 = vadd.f32 %v672, %v767
    %v769 = vpop.f32.mrb[0].mxu0
    %v770 = vadd.f32 %v672, %v769
    %771 = vmatprep.mubr.f32.mxu0 0.0
    %772 = vmatmul.mubr.f32.gmra.mrb[0].mxu0 %v693
    %v773 = vpop.f32.mrb[0].mxu0
    %v774 = vadd.f32 %v677, %v773
    %v775 = vpop.f32.mrb[0].mxu0
    %v776 = vadd.f32 %v677, %v775
    %777 = vmatprep.mubr.f32.mxu0 0.0
    %778 = vmatmul.mubr.f32.gmra.mrb[0].mxu0 %v696
    %v779 = vpop.f32.mrb[0].mxu0
    %v780 = vadd.f32 %v682, %v779
    %v781 = vpop.f32.mrb[0].mxu0
    %v782 = vadd.f32 %v682, %v781
    %783 = vmatprep.mubr.f32.mxu0 0.0
    %784 = vmatmul.mubr.f32.gmra.mrb[0].mxu0 %v699
    %v785 = vpop.f32.mrb[0].mxu0
    %v786 = vadd.f32 %v687, %v785
    %v787 = vpop.f32.mrb[0].mxu0
    %v788 = vadd.f32 %v687, %v787
    %789 = vdwg.mxu0
    %v790 = vand.u32 2147483647, %v768
    %v791 = vand.u32 2147483647, %v770
    %v792 = vand.u32 2147483647, %v774
    %v793 = vand.u32 2147483647, %v776
    %v794 = vand.u32 2147483647, %v780
    %v795 = vand.u32 2147483647, %v782
    %v796 = vand.u32 2147483647, %v786
    %v797 = vand.u32 2147483647, %v788
    %v798 = vsub.f32 0.0, %v790
    %v799 = vsub.f32 0.0, %v791
    %v800 = vsub.f32 0.0, %v792
    %v801 = vsub.f32 0.0, %v793
    %v802 = vsub.f32 0.0, %v794
    %v803 = vsub.f32 0.0, %v795
    %v804 = vsub.f32 0.0, %v796
    %v805 = vsub.f32 0.0, %v797
    %v806 = vmul.f32 %v798, 1.442695
    %v807 = vpow.pop %v806
    %v808 = vmul.f32 %v799, 1.442695
    %v809 = vpow.pop %v808
    %v810 = vmul.f32 %v800, 1.442695
    %v811 = vpow.pop %v810
    %v812 = vmul.f32 %v801, 1.442695
    %v813 = vpow.pop %v812
    %v814 = vmul.f32 %v802, 1.442695
    %v815 = vpow.pop %v814
    %v816 = vmul.f32 %v803, 1.442695
    %v817 = vpow.pop %v816
    %v818 = vmul.f32 %v804, 1.442695
    %v819 = vpow.pop %v818
    %v820 = vmul.f32 %v805, 1.442695
    %v821 = vpow.pop %v820
    %v822 = vadd.f32 %v807, 1.0
    %v823 = vlog2.pop %v822
    %v824 = vmul.f32 %v823, 0.6931472
    %v825 = vmul.f32 -0.5, %v807
    %v826 = vadd.f32 %v825, 1.0
    %v827 = vmul.f32 %v826, %v807
    %v828 = vand.u32 2147483647, %v807
    %vm829 = vcmp.lt.f32.partialorder %v828, 0.0004427343
    %v830 = vsel %vm829, %v827, %v824
    %v831 = vadd.f32 %v809, 1.0
    %v832 = vlog2.pop %v831
    %v833 = vmul.f32 %v832, 0.6931472
    %v834 = vmul.f32 -0.5, %v809
    %v835 = vadd.f32 %v834, 1.0
    %v836 = vmul.f32 %v835, %v809
    %v837 = vand.u32 2147483647, %v809
    %vm838 = vcmp.lt.f32.partialorder %v837, 0.0004427343
    %v839 = vsel %vm838, %v836, %v833
    %v840 = vadd.f32 %v811, 1.0
    %v841 = vlog2.pop %v840
    %v842 = vmul.f32 %v841, 0.6931472
    %v843 = vmul.f32 -0.5, %v811
    %v844 = vadd.f32 %v843, 1.0
    %v845 = vmul.f32 %v844, %v811
    %v846 = vand.u32 2147483647, %v811
    %vm847 = vcmp.lt.f32.partialorder %v846, 0.0004427343
    %v848 = vsel %vm847, %v845, %v842
    %v849 = vadd.f32 %v813, 1.0
    %v850 = vlog2.pop %v849
    %v851 = vmul.f32 %v850, 0.6931472
    %v852 = vmul.f32 -0.5, %v813
    %v853 = vadd.f32 %v852, 1.0
    %v854 = vmul.f32 %v853, %v813
    %v855 = vand.u32 2147483647, %v813
    %vm856 = vcmp.lt.f32.partialorder %v855, 0.0004427343
    %v857 = vsel %vm856, %v854, %v851
    %v858 = vadd.f32 %v815, 1.0
    %v859 = vlog2.pop %v858
    %v860 = vmul.f32 %v859, 0.6931472
    %v861 = vmul.f32 -0.5, %v815
    %v862 = vadd.f32 %v861, 1.0
    %v863 = vmul.f32 %v862, %v815
    %v864 = vand.u32 2147483647, %v815
    %vm865 = vcmp.lt.f32.partialorder %v864, 0.0004427343
    %v866 = vsel %vm865, %v863, %v860
    %v867 = vadd.f32 %v817, 1.0
    %v868 = vlog2.pop %v867
    %v869 = vmul.f32 %v868, 0.6931472
    %v870 = vmul.f32 -0.5, %v817
    %v871 = vadd.f32 %v870, 1.0
    %v872 = vmul.f32 %v871, %v817
    %v873 = vand.u32 2147483647, %v817
    %vm874 = vcmp.lt.f32.partialorder %v873, 0.0004427343
    %v875 = vsel %vm874, %v872, %v869
    %v876 = vadd.f32 %v819, 1.0
    %v877 = vlog2.pop %v876
    %v878 = vmul.f32 %v877, 0.6931472
    %v879 = vmul.f32 -0.5, %v819
    %v880 = vadd.f32 %v879, 1.0
    %v881 = vmul.f32 %v880, %v819
    %v882 = vand.u32 2147483647, %v819
    %vm883 = vcmp.lt.f32.partialorder %v882, 0.0004427343
    %v884 = vsel %vm883, %v881, %v878
    %v885 = vadd.f32 %v821, 1.0
    %v886 = vlog2.pop %v885
    %v887 = vmul.f32 %v886, 0.6931472
    %v888 = vmul.f32 -0.5, %v821
    %v889 = vadd.f32 %v888, 1.0
    %v890 = vmul.f32 %v889, %v821
    %v891 = vand.u32 2147483647, %v821
    %vm892 = vcmp.lt.f32.partialorder %v891, 0.0004427343
    %v893 = vsel %vm892, %v890, %v887
    %v894 = vmax.f32 %v768, 0.0
    %v895 = vmax.f32 %v770, 0.0
    %v896 = vmax.f32 %v774, 0.0
    %v897 = vmax.f32 %v776, 0.0
    %v898 = vmax.f32 %v780, 0.0
    %v899 = vmax.f32 %v782, 0.0
    %v900 = vmax.f32 %v786, 0.0
    %v901 = vmax.f32 %v788, 0.0
    %v902 = vadd.f32 %v894, %v830
    %v903 = vadd.f32 %v895, %v839
    %v904 = vadd.f32 %v896, %v848
    %v905 = vadd.f32 %v897, %v857
    %v906 = vadd.f32 %v898, %v866
    %v907 = vadd.f32 %v899, %v875
    %v908 = vadd.f32 %v900, %v884
    %v909 = vadd.f32 %v901, %v893
    %v910 = vld [vmem:[%s7] sm:$0xff]
    %v911 = vld [vmem:[%s8] sm:$0xff]
    %913 = vset.pattern.permute.xlu0 0
    %914 = vperm.xlu0 %913, %v911
    %v915 = vpop.permute.xlu0 %914
    %v918 = vsel %vm439, %v910, 0
    %920 = vmatprep.subr.mxu0 %v903
    %921 = vmatpush1.msra.mxu0 %v902
    %922 = vmatprep.subr.mxu0 %v905
    %923 = vmatpush1.msra.mxu0 %v904
    %924 = vmatprep.subr.mxu0 %v907
    %925 = vmatpush1.msra.mxu0 %v906
    %926 = vmatprep.subr.mxu0 %v909
    %927 = vmatpush1.msra.mxu0 %v908
    %928 = vmatprep.subr.mxu0 0.0
    %929 = vmatpush1.msra.mxu0 0.0
    %930 = vmatprep.subr.mxu0 0.0
    %931 = vmatpush1.msra.mxu0 0.0
    %932 = vmatprep.subr.mxu0 0.0
    %933 = vmatpush1.msra.mxu0 0.0
    %934 = vmatprep.subr.mxu0 0.0
    %935 = vmatpush1.msra.mxu0 0.0
    %936 = vmatprep.subr.mxu0 0.0
    %937 = vmatpush1.msra.mxu0 0.0
    %938 = vmatprep.subr.mxu0 0.0
    %939 = vmatpush1.msra.mxu0 0.0
    %940 = vmatprep.subr.mxu0 0.0
    %941 = vmatpush1.msra.mxu0 0.0
    %942 = vmatprep.subr.mxu0 0.0
    %943 = vmatpush1.msra.mxu0 0.0
    %944 = vmatprep.subr.mxu0 0.0
    %945 = vmatpush1.msra.mxu0 0.0
    %946 = vmatprep.subr.mxu0 0.0
    %947 = vmatpush1.msra.mxu0 0.0
    %948 = vmatprep.subr.mxu0 0.0
    %949 = vmatpush1.msra.mxu0 0.0
    %950 = vmatprep.subr.mxu0 0.0
    %951 = vmatpush1.msra.mxu0 0.0
    %952 = vmatprep.subr.mxu0 0.0
    %953 = vmatpush1.msra.mxu0 0.0
    %954 = vmatprep.subr.mxu0 0.0
    %955 = vmatpush1.msra.mxu0 0.0
    %956 = vmatprep.subr.mxu0 0.0
    %957 = vmatpush1.msra.mxu0 0.0
    %958 = vmatprep.subr.mxu0 0.0
    %959 = vmatpush1.msra.mxu0 0.0
    %960 = vmatprep.subr.mxu0 0.0
    %961 = vmatpush1.msra.mxu0 0.0
    %962 = vmatprep.subr.mxu0 0.0
    %963 = vmatpush1.msra.mxu0 0.0
    %964 = vmatprep.subr.mxu0 0.0
    %965 = vmatpush1.msra.mxu0 0.0
    %966 = vmatprep.subr.mxu0 0.0
    %967 = vmatpush1.msra.mxu0 0.0
    %968 = vmatprep.subr.mxu0 0.0
    %969 = vmatpush1.msra.mxu0 0.0
    %970 = vmatprep.subr.mxu0 0.0
    %971 = vmatpush1.msra.mxu0 0.0
    %972 = vmatprep.subr.mxu0 0.0
    %973 = vmatpush1.msra.mxu0 0.0
    %974 = vmatprep.subr.mxu0 0.0
    %975 = vmatpush1.msra.mxu0 0.0
    %976 = vmatprep.subr.mxu0 0.0
    %977 = vmatpush1.msra.mxu0 0.0
    %978 = vmatprep.subr.mxu0 0.0
    %979 = vmatpush1.msra.mxu0 0.0
    %980 = vmatprep.subr.mxu0 0.0
    %981 = vmatpush1.msra.mxu0 0.0
    %982 = vmatprep.subr.mxu0 0.0
    %983 = vmatpush1.msra.mxu0 0.0
    %984 = vmatprep.mubr.f32.mxu0 0.0
    %985 = vmatmul.mubr.f32.gmra.mrb[0].mxu0 %v918
    %v986 = vpop.f32.mrb[0].mxu0
    %v987 = vadd.f32 %v915, %v986
    %v988 = vpop.f32.mrb[0].mxu0
    %v989 = vadd.f32 %v915, %v988
    %990 = vdwg.mxu0
    %991 = vst [vmem:[#allocation2] sm:$0xff] %v987
    %992 = vst [vmem:[#allocation2 + $0x8] sm:$0xff] %v989
    // Predicated region
    $region38: #{tpu_custom_call.1} parent=1 // pred_check
      _
    $region39: #{tpu_custom_call.1} parent=1 // pred_check_branch
      %994 = sbr.rel (0) target = $region41
    $region40: #{tpu_custom_call.1} parent=1 // pred_region
      %s996 = ssub.s32 256, 256
      %997 = vsyncadd [#allocation3], %s996
      %s999 = sshll.u32 [#allocation2], 4
      %s1000 = int_to_ptr.vmem [resolvable:$true] %s999
      %1002 = dma.vmem_to_hbm [thread:$0]  %s1000, 256, %s9, [#allocation3]
    $region41: #{tpu_custom_call.1} parent=1 // pred_fallthru
      _
    // Predicated region
    $region42: #{tpu_custom_call.1} parent=1 // pred_check
      _
    $region43: #{tpu_custom_call.1} parent=1 // pred_check_branch
      %1004 = sbr.rel (0) target = $region45
    $region44: #{tpu_custom_call.1} parent=1 // pred_region
      %1005 = dma.done [#allocation3], 256
    $region45: #{tpu_custom_call.1} parent=1 // pred_fallthru
      _
    %1006 = vsyncpa [#allocation3], 1

</llo_original>
